<compile_context>
chip_gen: v7x
topology: tpu7x:2x2x1
jax: 0.10.0
libtpu: 0.0.40
codegen_flags: <defaults>
</compile_context>

<pallas_src>
import functools
import math

import jax
import jax.numpy as jnp
from jax import lax
from jax.experimental import pallas as pl
from jax.experimental.pallas import tpu as pltpu


def _round_up(x, m):
    return ((x + m - 1) // m) * m


# ----------------------- Pallas matmul + bias(+ReLU) ---------------------------

def _matmul_kernel(a_ref, b_ref, bias_ref, o_ref, *, act):
    k = pl.program_id(2)

    @pl.when(k == 0)
    def _():
        o_ref[...] = jnp.zeros_like(o_ref)

    # bf16 x bf16 -> f32 accumulation directly into the resident output block.
    o_ref[...] += jnp.dot(a_ref[...], b_ref[...],
                          preferred_element_type=jnp.float32)

    @pl.when(k == pl.num_programs(2) - 1)
    def _():
        r = o_ref[...] + bias_ref[...]
        if act == "relu":
            r = jnp.maximum(r, 0.0)
        o_ref[...] = r


@functools.lru_cache(maxsize=None)
def _get_matmul_fn(Mp, Np, Kp, tm, tn, tk, act):
    grid = (Mp // tm, Np // tn, Kp // tk)
    return pl.pallas_call(
        functools.partial(_matmul_kernel, act=act),
        out_shape=jax.ShapeDtypeStruct((Mp, Np), jnp.float32),
        grid_spec=pltpu.PrefetchScalarGridSpec(
            num_scalar_prefetch=0,
            grid=grid,
            in_specs=[
                pl.BlockSpec((tm, tk), lambda i, j, k: (i, k)),
                pl.BlockSpec((tk, tn), lambda i, j, k: (k, j)),
                pl.BlockSpec((1, tn), lambda i, j, k: (0, j)),
            ],
            out_specs=pl.BlockSpec((tm, tn), lambda i, j, k: (i, j)),
        ),
        compiler_params=pltpu.CompilerParams(
            dimension_semantics=("parallel", "parallel", "arbitrary")),
    )


def matmul_bias_act(a, b, bias, act="none"):
    """act(a @ b + bias); a:[M,K], b:[K,N], bias:[N]. bf16 operands, f32 acc."""
    M, K = a.shape
    K2, N = b.shape
    assert K == K2
    # Per-shape tiles: never pad a dimension past its own tile size.
    tm = min(512, _round_up(M, 16))     # bf16 sublane packing -> multiple of 16
    tn = min(256, _round_up(N, 128))
    tk = min(512, _round_up(K, 128))
    Mp, Np, Kp = _round_up(M, tm), _round_up(N, tn), _round_up(K, tk)
    a_p = jnp.pad(a.astype(jnp.bfloat16), ((0, Mp - M), (0, Kp - K)))
    b_p = jnp.pad(b.astype(jnp.bfloat16), ((0, Kp - K), (0, Np - N)))
    bias_p = jnp.pad(bias.astype(jnp.float32), (0, Np - N)).reshape(1, Np)
    out = _get_matmul_fn(Mp, Np, Kp, tm, tn, tk, act)(a_p, b_p, bias_p)
    return out[:M, :N]


# ---------------------- Pallas elementwise affine(+ReLU) -----------------------

TR = 512  # row tile (lane-dense, ~85% of HBM roofline at >=512 rows)


def _affine_kernel(x_ref, s_ref, b_ref, o_ref, *, relu):
    y = x_ref[...] * s_ref[...] + b_ref[...]
    if relu:
        y = jnp.maximum(y, 0.0)
    o_ref[...] = y


@functools.lru_cache(maxsize=None)
def _get_affine_fn(Mp, Cp, tr, relu):
    return pl.pallas_call(
        functools.partial(_affine_kernel, relu=relu),
        out_shape=jax.ShapeDtypeStruct((Mp, Cp), jnp.float32),
        grid_spec=pltpu.PrefetchScalarGridSpec(
            num_scalar_prefetch=0,
            grid=(Mp // tr,),
            in_specs=[
                pl.BlockSpec((tr, Cp), lambda i: (i, 0)),
                pl.BlockSpec((1, Cp), lambda i: (0, 0)),
                pl.BlockSpec((1, Cp), lambda i: (0, 0)),
            ],
            out_specs=pl.BlockSpec((tr, Cp), lambda i: (i, 0)),
        ),
        compiler_params=pltpu.CompilerParams(
            dimension_semantics=("parallel",)),
    )


def affine_act(x, scale, shift, relu):
    """relu?(x * scale + shift); x:[M,C], scale/shift:[C]."""
    M, C = x.shape
    tr = min(TR, _round_up(M, 8))
    Mp, Cp = _round_up(M, tr), _round_up(C, 128)
    x_p = jnp.pad(x.astype(jnp.float32), ((0, Mp - M), (0, Cp - C)))
    s_p = jnp.pad(scale.astype(jnp.float32), (0, Cp - C)).reshape(1, Cp)
    b_p = jnp.pad(shift.astype(jnp.float32), (0, Cp - C)).reshape(1, Cp)
    out = _get_affine_fn(Mp, Cp, tr, bool(relu))(x_p, s_p, b_p)
    return out[:M, :C]


# --------------------------------- JAX glue ------------------------------------

def extract_patches(x, kh, kw, stride, padding, dilation):
    """im2col in NHWC; fused into neighbours under jit."""
    if padding > 0:
        x = jnp.pad(x, ((0, 0), (padding, padding), (padding, padding), (0, 0)))
    B, H, W, C = x.shape
    eff_h = dilation * (kh - 1) + 1
    eff_w = dilation * (kw - 1) + 1
    Ho = (H - eff_h) // stride + 1
    Wo = (W - eff_w) // stride + 1
    cols = []
    for i in range(kh):
        for j in range(kw):
            sl = x[:, i * dilation: i * dilation + (Ho - 1) * stride + 1: stride,
                      j * dilation: j * dilation + (Wo - 1) * stride + 1: stride, :]
            cols.append(sl)
    return jnp.concatenate(cols, axis=-1), Ho, Wo


def conv2d(x, w, b, stride=1, padding=0, dilation=1, act="none"):
    """x: NHWC; w: [Cout, Cin, kh, kw] (PyTorch layout); b: [Cout]."""
    Cout, Cin, kh, kw = w.shape
    patches, Ho, Wo = extract_patches(x, kh, kw, stride, padding, dilation)
    B = x.shape[0]
    A = patches.reshape(B * Ho * Wo, kh * kw * Cin)
    Wm = jnp.transpose(w, (2, 3, 1, 0)).reshape(kh * kw * Cin, Cout)
    out = matmul_bias_act(A, Wm, b, act)
    return out.reshape(B, Ho, Wo, Cout)


def batchnorm_act(x, gamma, beta, relu, eps=1e-5):
    """Training-mode BatchNorm2d (batch statistics over N,H,W) + optional ReLU."""
    B, H, W, C = x.shape
    xf = x.reshape(B * H * W, C)
    mean = jnp.mean(xf, axis=0)
    var = jnp.mean(jnp.square(xf - mean), axis=0)   # biased, as PyTorch uses for normalization
    scale = gamma / jnp.sqrt(var + eps)
    shift = beta - mean * scale
    return affine_act(xf, scale, shift, relu).reshape(B, H, W, C)


def resize_bilinear_ac(x, out_h, out_w):
    """F.interpolate(mode='bilinear', align_corners=True), NHWC."""
    B, H, W, C = x.shape

    def coords(n_in, n_out):
        if n_out == 1 or n_in == 1:
            pos = jnp.zeros((n_out,), jnp.float32)
        else:
            pos = jnp.arange(n_out, dtype=jnp.float32) * (n_in - 1) / (n_out - 1)
        i0 = jnp.clip(jnp.floor(pos).astype(jnp.int32), 0, n_in - 1)
        i1 = jnp.clip(i0 + 1, 0, n_in - 1)
        frac = pos - i0.astype(jnp.float32)
        return i0, i1, frac

    y0, y1, fy = coords(H, out_h)
    x0, x1, fx = coords(W, out_w)
    fy = fy.reshape(1, out_h, 1, 1)
    fx = fx.reshape(1, 1, out_w, 1)
    r0, r1 = x[:, y0], x[:, y1]
    top = r0[:, :, x0] * (1.0 - fx) + r0[:, :, x1] * fx
    bot = r1[:, :, x0] * (1.0 - fx) + r1[:, :, x1] * fx
    return top * (1.0 - fy) + bot * fy


# ------------------------------ BasicConv forward -------------------------------

def basic_conv_apply(params, x_nchw, *, stride=1, padding=0, dilation=1,
                     groups=1, relu=True, bn=True, up_size=0, eps=1e-5):
    assert groups == 1  # TODO(synk): grouped convolution (groups>1) not implemented
    x = jnp.transpose(x_nchw, (0, 2, 3, 1)).astype(jnp.float32)   # NCHW -> NHWC
    # If there is no BN the ReLU fuses into the GEMM epilogue.
    act = "relu" if (relu and not bn) else "none"
    y = conv2d(x, params["w"], params["b"], stride, padding, dilation, act=act)
    if bn:
        y = batchnorm_act(y, params["gamma"], params["beta"], relu=relu, eps=eps)
    if up_size > 0:
        y = resize_bilinear_ac(y, up_size, up_size)
    return jnp.transpose(y, (0, 3, 1, 2))                         # back to NCHW


# ------------------------------ pure-JAX reference ------------------------------

def basic_conv_ref(params, x_nchw, *, stride=1, padding=0, dilation=1,
                   relu=True, bn=True, up_size=0, eps=1e-5):
    x = jnp.transpose(x_nchw, (0, 2, 3, 1)).astype(jnp.float32)
    w_hwio = jnp.transpose(params["w"], (2, 3, 1, 0))
    y = lax.conv_general_dilated(
        x, w_hwio, window_strides=(stride, stride),
        padding=[(padding, padding), (padding, padding)],
        rhs_dilation=(dilation, dilation),
        dimension_numbers=("NHWC", "HWIO", "NHWC"))
    y = y + params["b"]
    if bn:
        mean = jnp.mean(y, axis=(0, 1, 2))
        var = jnp.mean(jnp.square(y - mean), axis=(0, 1, 2))
        y = (y - mean) / jnp.sqrt(var + eps) * params["gamma"] + params["beta"]
    if relu:
        y = jnp.maximum(y, 0.0)
    if up_size > 0:
        y = resize_bilinear_ac(y, up_size, up_size)
    return jnp.transpose(y, (0, 3, 1, 2))


# ----------------------------------- main ---------------------------------------

def _make_params(key, cout, cin, k):
    k1, k2, k3, k4 = jax.random.split(key, 4)
    std = math.sqrt(2.0 / (cin * k * k))
    return {
        "w": jax.random.normal(k1, (cout, cin, k, k), jnp.float32) * std,
        "b": jax.random.normal(k2, (cout,), jnp.float32) * 0.1,
        "gamma": 1.0 + 0.1 * jax.random.normal(k3, (cout,), jnp.float32),
        "beta": 0.1 * jax.random.normal(k4, (cout,), jnp.float32),
    }


if __name__ == "__main__":
    root = jax.random.PRNGKey(0)
    kx, kp1, kp2, kp3 = jax.random.split(root, 4)

    B, Cin, H, W, Cout = 2, 4, 16, 16, 8
    x = jax.random.normal(kx, (B, Cin, H, W), jnp.float32)

    # Three BasicConv configurations covering every code path:
    #   (a) 3x3, pad=1, BN + ReLU                (conv GEMM -> BN affine+ReLU kernel)
    #   (b) 1x1, BN + ReLU, up_size=32           (adds bilinear align_corners resize)
    #   (c) 3x3, pad=1, no BN, ReLU              (ReLU fused into the GEMM epilogue)
    configs = [
        dict(stride=1, padding=1, dilation=1, relu=True, bn=True, up_size=0),
        dict(stride=1, padding=0, dilation=1, relu=True, bn=True, up_size=32),
        dict(stride=1, padding=1, dilation=1, relu=True, bn=False, up_size=0),
    ]
    ksz = [3, 1, 3]
    params = [_make_params(k, Cout, Cin, s) for k, s in zip((kp1, kp2, kp3), ksz)]
    expected = [(B, Cout, 16, 16), (B, Cout, 32, 32), (B, Cout, 16, 16)]

    for p, cfg, exp in zip(params, configs, expected):
        fwd = jax.jit(functools.partial(basic_conv_apply, **cfg))
        out = jax.block_until_ready(fwd(p, x))
        assert out.shape == exp, (out.shape, exp)
        assert bool(jnp.all(jnp.isfinite(out)))
        ref = jax.block_until_ready(jax.jit(functools.partial(basic_conv_ref, **cfg))(p, x))
        err = float(jnp.max(jnp.abs(out - ref)))
        assert err < 1e-1, f"max abs err {err} for cfg {cfg}"

    print("KERNEL_OK")
</pallas_src>

<mosaic_0001>
module attributes {stable_mosaic.version = 11 : i64} {
  func.func @_matmul_kernel(%arg0: i32, %arg1: i32, %arg2: i32, %arg3: memref<512x128xbf16, #tpu.memory_space<vmem>>, %arg4: memref<128x128xbf16, #tpu.memory_space<vmem>>, %arg5: memref<1x128xf32, #tpu.memory_space<vmem>>, %arg6: memref<512x128xf32, #tpu.memory_space<vmem>>) attributes {dimension_semantics = [#tpu.dimension_semantics<parallel>, #tpu.dimension_semantics<parallel>, #tpu.dimension_semantics<arbitrary>], iteration_bounds = array<i64: 1, 1, 1>, scalar_prefetch = 0 : i64, scratch_operands = 0 : i64, tpu.core_type = #tpu.core_type<tc>, window_params = [{transform_indices = @transform_0, window_bounds = array<i64: 512, 128>}, {transform_indices = @transform_1, window_bounds = array<i64: 128, 128>}, {transform_indices = @transform_2, window_bounds = array<i64: 1, 128>}, {transform_indices = @transform_3, window_bounds = array<i64: 512, 128>}]} {
    %c0_i32 = arith.constant 0 : i32
    %0 = arith.cmpi eq, %arg2, %c0_i32 : i32
    %1 = arith.extui %0 : i1 to i32
    %c0_i32_0 = arith.constant 0 : i32
    %2 = arith.cmpi ne, %1, %c0_i32_0 : i32
    scf.if %2 {
      %cst_10 = arith.constant 0.000000e+00 : f32
      %12 = vector.broadcast %cst_10 : f32 to vector<512x128xf32>
      %c0_11 = arith.constant 0 : index
      %c0_12 = arith.constant 0 : index
      %13 = vector.load %arg6[%c0_11, %c0_12] : memref<512x128xf32, #tpu.memory_space<vmem>>, vector<512x128xf32>
      tpu.vector_store %arg6[%c0_11, %c0_12], %12 {strides = array<i32>} : memref<512x128xf32, #tpu.memory_space<vmem>>, vector<512x128xf32>,
    } else {
    }
    %c0 = arith.constant 0 : index
    %c0_1 = arith.constant 0 : index
    %3 = vector.load %arg6[%c0, %c0_1] : memref<512x128xf32, #tpu.memory_space<vmem>>, vector<512x128xf32>
    %c0_2 = arith.constant 0 : index
    %c0_3 = arith.constant 0 : index
    %4 = vector.load %arg3[%c0_2, %c0_3] : memref<512x128xbf16, #tpu.memory_space<vmem>>, vector<512x128xbf16>
    %c0_4 = arith.constant 0 : index
    %c0_5 = arith.constant 0 : index
    %5 = vector.load %arg4[%c0_4, %c0_5] : memref<128x128xbf16, #tpu.memory_space<vmem>>, vector<128x128xbf16>
    %cst = arith.constant dense<0.000000e+00> : vector<512x128xf32>
    %6 = tpu.matmul %4, %5, %cst {dimension_numbers = #tpu.dot_dimension_numbers<[1], [0], [0], [1], [0, 0, 1, 1], [], []>} : vector<512x128xbf16>, vector<128x128xbf16>, vector<512x128xf32> -> vector<512x128xf32>
    %7 = arith.addf %3, %6 : vector<512x128xf32>
    %c0_6 = arith.constant 0 : index
    %c0_7 = arith.constant 0 : index
    %8 = vector.load %arg6[%c0_6, %c0_7] : memref<512x128xf32, #tpu.memory_space<vmem>>, vector<512x128xf32>
    tpu.vector_store %arg6[%c0_6, %c0_7], %7 {strides = array<i32>} : memref<512x128xf32, #tpu.memory_space<vmem>>, vector<512x128xf32>,
    %c0_i32_8 = arith.constant 0 : i32
    %9 = arith.cmpi eq, %arg2, %c0_i32_8 : i32
    %10 = arith.extui %9 : i1 to i32
    %c0_i32_9 = arith.constant 0 : i32
    %11 = arith.cmpi ne, %10, %c0_i32_9 : i32
    scf.if %11 {
      %c0_10 = arith.constant 0 : index
      %c0_11 = arith.constant 0 : index
      %12 = vector.load %arg6[%c0_10, %c0_11] : memref<512x128xf32, #tpu.memory_space<vmem>>, vector<512x128xf32>
      %c0_12 = arith.constant 0 : index
      %c0_13 = arith.constant 0 : index
      %13 = vector.load %arg5[%c0_12, %c0_13] : memref<1x128xf32, #tpu.memory_space<vmem>>, vector<1x128xf32>
      %14 = vector.broadcast %13 : vector<1x128xf32> to vector<512x128xf32>
      %15 = arith.addf %12, %14 : vector<512x128xf32>
      %c0_14 = arith.constant 0 : index
      %c0_15 = arith.constant 0 : index
      %16 = vector.load %arg6[%c0_14, %c0_15] : memref<512x128xf32, #tpu.memory_space<vmem>>, vector<512x128xf32>
      tpu.vector_store %arg6[%c0_14, %c0_15], %15 {strides = array<i32>} : memref<512x128xf32, #tpu.memory_space<vmem>>, vector<512x128xf32>,
    } else {
    }
    return
  }
  func.func @transform_0(%arg0: i32, %arg1: i32, %arg2: i32) -> (i32, i32) {
    %c0_i32 = arith.constant 0 : i32
    return %arg0, %arg2 : i32, i32
  }
  func.func @transform_1(%arg0: i32, %arg1: i32, %arg2: i32) -> (i32, i32) {
    %c0_i32 = arith.constant 0 : i32
    return %arg2, %arg1 : i32, i32
  }
  func.func @transform_2(%arg0: i32, %arg1: i32, %arg2: i32) -> (i32, i32) {
    %c0_i32 = arith.constant 0 : i32
    %c0_i32_0 = arith.constant 0 : i32
    return %c0_i32, %arg1 : i32, i32
  }
  func.func @transform_3(%arg0: i32, %arg1: i32, %arg2: i32) -> (i32, i32) {
    %c0_i32 = arith.constant 0 : i32
    return %arg0, %arg1 : i32, i32
  }
}

module attributes {stable_mosaic.version = 11 : i64} {
  func.func @_affine_kernel(%arg0: i32, %arg1: memref<512x128xf32, #tpu.memory_space<vmem>>, %arg2: memref<1x128xf32, #tpu.memory_space<vmem>>, %arg3: memref<1x128xf32, #tpu.memory_space<vmem>>, %arg4: memref<512x128xf32, #tpu.memory_space<vmem>>) attributes {dimension_semantics = [#tpu.dimension_semantics<parallel>], iteration_bounds = array<i64: 1>, scalar_prefetch = 0 : i64, scratch_operands = 0 : i64, tpu.core_type = #tpu.core_type<tc>, window_params = [{transform_indices = @transform_0, window_bounds = array<i64: 512, 128>}, {pipeline_mode = #tpu.pipeline_mode<synchronous>, transform_indices = @transform_1, window_bounds = array<i64: 1, 128>}, {pipeline_mode = #tpu.pipeline_mode<synchronous>, transform_indices = @transform_2, window_bounds = array<i64: 1, 128>}, {transform_indices = @transform_3, window_bounds = array<i64: 512, 128>}]} {
    %c0 = arith.constant 0 : index
    %c0_0 = arith.constant 0 : index
    %0 = vector.load %arg1[%c0, %c0_0] : memref<512x128xf32, #tpu.memory_space<vmem>>, vector<512x128xf32>
    %c0_1 = arith.constant 0 : index
    %c0_2 = arith.constant 0 : index
    %1 = vector.load %arg2[%c0_1, %c0_2] : memref<1x128xf32, #tpu.memory_space<vmem>>, vector<1x128xf32>
    %2 = vector.broadcast %1 : vector<1x128xf32> to vector<512x128xf32>
    %3 = arith.mulf %0, %2 : vector<512x128xf32>
    %c0_3 = arith.constant 0 : index
    %c0_4 = arith.constant 0 : index
    %4 = vector.load %arg3[%c0_3, %c0_4] : memref<1x128xf32, #tpu.memory_space<vmem>>, vector<1x128xf32>
    %5 = vector.broadcast %4 : vector<1x128xf32> to vector<512x128xf32>
    %6 = arith.addf %3, %5 : vector<512x128xf32>
    %cst = arith.constant 0.000000e+00 : f32
    %7 = vector.broadcast %cst : f32 to vector<512x128xf32>
    %8 = arith.maximumf %6, %7 : vector<512x128xf32>
    %c0_5 = arith.constant 0 : index
    %c0_6 = arith.constant 0 : index
    %9 = vector.load %arg4[%c0_5, %c0_6] : memref<512x128xf32, #tpu.memory_space<vmem>>, vector<512x128xf32>
    tpu.vector_store %arg4[%c0_5, %c0_6], %8 {strides = array<i32>} : memref<512x128xf32, #tpu.memory_space<vmem>>, vector<512x128xf32>,
    return
  }
  func.func @transform_0(%arg0: i32) -> (i32, i32) {
    %c0_i32 = arith.constant 0 : i32
    %c0_i32_0 = arith.constant 0 : i32
    return %arg0, %c0_i32 : i32, i32
  }
  func.func @transform_1(%arg0: i32) -> (i32, i32) {
    %c0_i32 = arith.constant 0 : i32
    %c0_i32_0 = arith.constant 0 : i32
    %c0_i32_1 = arith.constant 0 : i32
    return %c0_i32, %c0_i32_0 : i32, i32
  }
  func.func @transform_2(%arg0: i32) -> (i32, i32) {
    %c0_i32 = arith.constant 0 : i32
    %c0_i32_0 = arith.constant 0 : i32
    %c0_i32_1 = arith.constant 0 : i32
    return %c0_i32, %c0_i32_0 : i32, i32
  }
  func.func @transform_3(%arg0: i32) -> (i32, i32) {
    %c0_i32 = arith.constant 0 : i32
    %c0_i32_0 = arith.constant 0 : i32
    return %arg0, %c0_i32 : i32, i32
  }
}

</mosaic_0001>

<llo_original>
// kernel: basic_conv_apply.3
$region0: #{basic_conv_apply.3}
  #allocation0 [shape = 'u32[]', space=smem, size = 0x4, offset = 0x4, fixed_abs, tag = 'smem constant byte address 0x4 - core index']
  #allocation1 [shape = 'u32[144,128]{1,0:T(1,128)}', space=vmem, size = 0x12000, scoped, tag = 'internal scratch']
  %s0 = inlined_call_operand.vmem [shape: f32[512,128], index: 0, kind: input, shape index: {}]
  %s1 = inlined_call_operand.vmem [shape: f32[1,128], index: 1, kind: input, shape index: {}]
  %s2 = inlined_call_operand.vmem [shape: f32[1,128], index: 2, kind: input, shape index: {}]
  %s3 = inlined_call_operand.vmem [shape: f32[512,128], index: 3, kind: output, shape index: {}]
  %s4 = sld [smem:[#allocation0]]
  $region22: #{basic_conv_apply.3} parent=0
    _
  %s6 = ssub.s32 1, %s4
  %s7 = scalar_select 0, %s6, %s4
  // Predicated region
  $region2: #{basic_conv_apply.3} parent=0 // pred_check
    _
  $region3: #{basic_conv_apply.3} parent=0 // pred_check_branch
    %9 = sbr.rel (0) target = $region5
  $region4: #{basic_conv_apply.3} parent=0 // pred_region
    _
  $region5: #{basic_conv_apply.3} parent=0 // pred_fallthru
    _
  // Predicated region
  $region6: #{basic_conv_apply.3} parent=0 // pred_check
    _
  $region7: #{basic_conv_apply.3} parent=0 // pred_check_branch
    %11 = sbr.rel (0) target = $region9
  $region8: #{basic_conv_apply.3} parent=0 // pred_region
    _
  $region9: #{basic_conv_apply.3} parent=0 // pred_fallthru
    _
  // Predicated region
  $region10: #{basic_conv_apply.3} parent=0 // pred_check
    _
  $region11: #{basic_conv_apply.3} parent=0 // pred_check_branch
    %13 = sbr.rel (0) target = $region13
  $region12: #{basic_conv_apply.3} parent=0 // pred_region
    _
  $region13: #{basic_conv_apply.3} parent=0 // pred_fallthru
    _
  %v14 = vld [vmem:[%s0] sm:$0xff]
  %v15 = vld [vmem:[%s0 + $0x8] sm:$0xff]
  %v16 = vld [vmem:[%s0 + $0x10] sm:$0xff]
  %v17 = vld [vmem:[%s0 + $0x18] sm:$0xff]
  %v18 = vld [vmem:[%s0 + $0x20] sm:$0xff]
  %v19 = vld [vmem:[%s0 + $0x28] sm:$0xff]
  %v20 = vld [vmem:[%s0 + $0x30] sm:$0xff]
  %v21 = vld [vmem:[%s0 + $0x38] sm:$0xff]
  %v22 = vld [vmem:[%s0 + $0x40] sm:$0xff]
  %v23 = vld [vmem:[%s0 + $0x48] sm:$0xff]
  %v24 = vld [vmem:[%s0 + $0x50] sm:$0xff]
  %v25 = vld [vmem:[%s0 + $0x58] sm:$0xff]
  %v26 = vld [vmem:[%s0 + $0x60] sm:$0xff]
  %v27 = vld [vmem:[%s0 + $0x68] sm:$0xff]
  %v28 = vld [vmem:[%s0 + $0x70] sm:$0xff]
  %v29 = vld [vmem:[%s0 + $0x78] sm:$0xff]
  %v30 = vld [vmem:[%s0 + $0x80] sm:$0xff]
  %v31 = vld [vmem:[%s0 + $0x88] sm:$0xff]
  %v32 = vld [vmem:[%s0 + $0x90] sm:$0xff]
  %v33 = vld [vmem:[%s0 + $0x98] sm:$0xff]
  %v34 = vld [vmem:[%s0 + $0xa0] sm:$0xff]
  %v35 = vld [vmem:[%s0 + $0xa8] sm:$0xff]
  %v36 = vld [vmem:[%s0 + $0xb0] sm:$0xff]
  %v37 = vld [vmem:[%s0 + $0xb8] sm:$0xff]
  %v38 = vld [vmem:[%s0 + $0xc0] sm:$0xff]
  %v39 = vld [vmem:[%s0 + $0xc8] sm:$0xff]
  %v40 = vld [vmem:[%s0 + $0xd0] sm:$0xff]
  %v41 = vld [vmem:[%s0 + $0xd8] sm:$0xff]
  %v42 = vld [vmem:[%s0 + $0xe0] sm:$0xff]
  %v43 = vld [vmem:[%s0 + $0xe8] sm:$0xff]
  %v44 = vld [vmem:[%s0 + $0xf0] sm:$0xff]
  %v45 = vld [vmem:[%s0 + $0xf8] sm:$0xff]
  %v46 = vld [vmem:[%s0 + $0x100] sm:$0xff]
  %v47 = vld [vmem:[%s0 + $0x108] sm:$0xff]
  %v48 = vld [vmem:[%s0 + $0x110] sm:$0xff]
  %v49 = vld [vmem:[%s0 + $0x118] sm:$0xff]
  %v50 = vld [vmem:[%s0 + $0x120] sm:$0xff]
  %v51 = vld [vmem:[%s0 + $0x128] sm:$0xff]
  %v52 = vld [vmem:[%s0 + $0x130] sm:$0xff]
  %v53 = vld [vmem:[%s0 + $0x138] sm:$0xff]
  %v54 = vld [vmem:[%s0 + $0x140] sm:$0xff]
  %v55 = vld [vmem:[%s0 + $0x148] sm:$0xff]
  %v56 = vld [vmem:[%s0 + $0x150] sm:$0xff]
  %v57 = vld [vmem:[%s0 + $0x158] sm:$0xff]
  %v58 = vld [vmem:[%s0 + $0x160] sm:$0xff]
  %v59 = vld [vmem:[%s0 + $0x168] sm:$0xff]
  %v60 = vld [vmem:[%s0 + $0x170] sm:$0xff]
  %v61 = vld [vmem:[%s0 + $0x178] sm:$0xff]
  %v62 = vld [vmem:[%s0 + $0x180] sm:$0xff]
  %v63 = vld [vmem:[%s0 + $0x188] sm:$0xff]
  %v64 = vld [vmem:[%s0 + $0x190] sm:$0xff]
  %v65 = vld [vmem:[%s0 + $0x198] sm:$0xff]
  %v66 = vld [vmem:[%s0 + $0x1a0] sm:$0xff]
  %v67 = vld [vmem:[%s0 + $0x1a8] sm:$0xff]
  %v68 = vld [vmem:[%s0 + $0x1b0] sm:$0xff]
  %v69 = vld [vmem:[%s0 + $0x1b8] sm:$0xff]
  %v70 = vld [vmem:[%s0 + $0x1c0] sm:$0xff]
  %v71 = vld [vmem:[%s0 + $0x1c8] sm:$0xff]
  %v72 = vld [vmem:[%s0 + $0x1d0] sm:$0xff]
  %v73 = vld [vmem:[%s0 + $0x1d8] sm:$0xff]
  %v74 = vld [vmem:[%s0 + $0x1e0] sm:$0xff]
  %v75 = vld [vmem:[%s0 + $0x1e8] sm:$0xff]
  %v76 = vld [vmem:[%s0 + $0x1f0] sm:$0xff]
  %v77 = vld [vmem:[%s0 + $0x1f8] sm:$0xff]
  %v78 = vld [vmem:[%s1] sm:$0x1]
  %v80 = vlaneseq
  %v81 = vshrl.u32 %v80, 7
  %v82 = vsub.s32 0, %v81
  %v83 = vrot.slane %v78, %v82
  %v85 = vmul.f32 %v14, %v83
  %v86 = vmul.f32 %v15, %v83
  %v87 = vmul.f32 %v16, %v83
  %v88 = vmul.f32 %v17, %v83
  %v89 = vmul.f32 %v18, %v83
  %v90 = vmul.f32 %v19, %v83
  %v91 = vmul.f32 %v20, %v83
  %v92 = vmul.f32 %v21, %v83
  %v93 = vmul.f32 %v22, %v83
  %v94 = vmul.f32 %v23, %v83
  %v95 = vmul.f32 %v24, %v83
  %v96 = vmul.f32 %v25, %v83
  %v97 = vmul.f32 %v26, %v83
  %v98 = vmul.f32 %v27, %v83
  %v99 = vmul.f32 %v28, %v83
  %v100 = vmul.f32 %v29, %v83
  %v101 = vmul.f32 %v30, %v83
  %v102 = vmul.f32 %v31, %v83
  %v103 = vmul.f32 %v32, %v83
  %v104 = vmul.f32 %v33, %v83
  %v105 = vmul.f32 %v34, %v83
  %v106 = vmul.f32 %v35, %v83
  %v107 = vmul.f32 %v36, %v83
  %v108 = vmul.f32 %v37, %v83
  %v109 = vmul.f32 %v38, %v83
  %v110 = vmul.f32 %v39, %v83
  %v111 = vmul.f32 %v40, %v83
  %v112 = vmul.f32 %v41, %v83
  %v113 = vmul.f32 %v42, %v83
  %v114 = vmul.f32 %v43, %v83
  %v115 = vmul.f32 %v44, %v83
  %v116 = vmul.f32 %v45, %v83
  %v117 = vmul.f32 %v46, %v83
  %v118 = vmul.f32 %v47, %v83
  %v119 = vmul.f32 %v48, %v83
  %v120 = vmul.f32 %v49, %v83
  %v121 = vmul.f32 %v50, %v83
  %v122 = vmul.f32 %v51, %v83
  %v123 = vmul.f32 %v52, %v83
  %v124 = vmul.f32 %v53, %v83
  %v125 = vmul.f32 %v54, %v83
  %v126 = vmul.f32 %v55, %v83
  %v127 = vmul.f32 %v56, %v83
  %v128 = vmul.f32 %v57, %v83
  %v129 = vmul.f32 %v58, %v83
  %v130 = vmul.f32 %v59, %v83
  %v131 = vmul.f32 %v60, %v83
  %v132 = vmul.f32 %v61, %v83
  %v133 = vmul.f32 %v62, %v83
  %v134 = vmul.f32 %v63, %v83
  %v135 = vmul.f32 %v64, %v83
  %v136 = vmul.f32 %v65, %v83
  %v137 = vmul.f32 %v66, %v83
  %v138 = vmul.f32 %v67, %v83
  %v139 = vmul.f32 %v68, %v83
  %v140 = vmul.f32 %v69, %v83
  %v141 = vmul.f32 %v70, %v83
  %v142 = vmul.f32 %v71, %v83
  %v143 = vmul.f32 %v72, %v83
  %v144 = vmul.f32 %v73, %v83
  %v145 = vmul.f32 %v74, %v83
  %v146 = vmul.f32 %v75, %v83
  %v147 = vmul.f32 %v76, %v83
  %v148 = vmul.f32 %v77, %v83
  %v149 = vld [vmem:[%s2] sm:$0x1]
  %v151 = vlaneseq
  %v152 = vshrl.u32 %v151, 7
  %v153 = vsub.s32 0, %v152
  %v154 = vrot.slane %v149, %v153
  %v156 = vadd.f32 %v85, %v154
  %v157 = vadd.f32 %v86, %v154
  %v158 = vadd.f32 %v87, %v154
  %v159 = vadd.f32 %v88, %v154
  %v160 = vadd.f32 %v89, %v154
  %v161 = vadd.f32 %v90, %v154
  %v162 = vadd.f32 %v91, %v154
  %v163 = vadd.f32 %v92, %v154
  %v164 = vadd.f32 %v93, %v154
  %v165 = vadd.f32 %v94, %v154
  %v166 = vadd.f32 %v95, %v154
  %v167 = vadd.f32 %v96, %v154
  %v168 = vadd.f32 %v97, %v154
  %v169 = vadd.f32 %v98, %v154
  %v170 = vadd.f32 %v99, %v154
  %v171 = vadd.f32 %v100, %v154
  %v172 = vadd.f32 %v101, %v154
  %v173 = vadd.f32 %v102, %v154
  %v174 = vadd.f32 %v103, %v154
  %v175 = vadd.f32 %v104, %v154
  %v176 = vadd.f32 %v105, %v154
  %v177 = vadd.f32 %v106, %v154
  %v178 = vadd.f32 %v107, %v154
  %v179 = vadd.f32 %v108, %v154
  %v180 = vadd.f32 %v109, %v154
  %v181 = vadd.f32 %v110, %v154
  %v182 = vadd.f32 %v111, %v154
  %v183 = vadd.f32 %v112, %v154
  %v184 = vadd.f32 %v113, %v154
  %v185 = vadd.f32 %v114, %v154
  %v186 = vadd.f32 %v115, %v154
  %v187 = vadd.f32 %v116, %v154
  %v188 = vadd.f32 %v117, %v154
  %v189 = vadd.f32 %v118, %v154
  %v190 = vadd.f32 %v119, %v154
  %v191 = vadd.f32 %v120, %v154
  %v192 = vadd.f32 %v121, %v154
  %v193 = vadd.f32 %v122, %v154
  %v194 = vadd.f32 %v123, %v154
  %v195 = vadd.f32 %v124, %v154
  %v196 = vadd.f32 %v125, %v154
  %v197 = vadd.f32 %v126, %v154
  %v198 = vadd.f32 %v127, %v154
  %v199 = vadd.f32 %v128, %v154
  %v200 = vadd.f32 %v129, %v154
  %v201 = vadd.f32 %v130, %v154
  %v202 = vadd.f32 %v131, %v154
  %v203 = vadd.f32 %v132, %v154
  %v204 = vadd.f32 %v133, %v154
  %v205 = vadd.f32 %v134, %v154
  %v206 = vadd.f32 %v135, %v154
  %v207 = vadd.f32 %v136, %v154
  %v208 = vadd.f32 %v137, %v154
  %v209 = vadd.f32 %v138, %v154
  %v210 = vadd.f32 %v139, %v154
  %v211 = vadd.f32 %v140, %v154
  %v212 = vadd.f32 %v141, %v154
  %v213 = vadd.f32 %v142, %v154
  %v214 = vadd.f32 %v143, %v154
  %v215 = vadd.f32 %v144, %v154
  %v216 = vadd.f32 %v145, %v154
  %v217 = vadd.f32 %v146, %v154
  %v218 = vadd.f32 %v147, %v154
  %v219 = vadd.f32 %v148, %v154
  %v220 = vmax.f32 %v156, 0.0
  %v221 = vmax.f32 %v157, 0.0
  %v222 = vmax.f32 %v158, 0.0
  %v223 = vmax.f32 %v159, 0.0
  %v224 = vmax.f32 %v160, 0.0
  %v225 = vmax.f32 %v161, 0.0
  %v226 = vmax.f32 %v162, 0.0
  %v227 = vmax.f32 %v163, 0.0
  %v228 = vmax.f32 %v164, 0.0
  %v229 = vmax.f32 %v165, 0.0
  %v230 = vmax.f32 %v166, 0.0
  %v231 = vmax.f32 %v167, 0.0
  %v232 = vmax.f32 %v168, 0.0
  %v233 = vmax.f32 %v169, 0.0
  %v234 = vmax.f32 %v170, 0.0
  %v235 = vmax.f32 %v171, 0.0
  %v236 = vmax.f32 %v172, 0.0
  %v237 = vmax.f32 %v173, 0.0
  %v238 = vmax.f32 %v174, 0.0
  %v239 = vmax.f32 %v175, 0.0
  %v240 = vmax.f32 %v176, 0.0
  %v241 = vmax.f32 %v177, 0.0
  %v242 = vmax.f32 %v178, 0.0
  %v243 = vmax.f32 %v179, 0.0
  %v244 = vmax.f32 %v180, 0.0
  %v245 = vmax.f32 %v181, 0.0
  %v246 = vmax.f32 %v182, 0.0
  %v247 = vmax.f32 %v183, 0.0
  %v248 = vmax.f32 %v184, 0.0
  %v249 = vmax.f32 %v185, 0.0
  %v250 = vmax.f32 %v186, 0.0
  %v251 = vmax.f32 %v187, 0.0
  %v252 = vmax.f32 %v188, 0.0
  %v253 = vmax.f32 %v189, 0.0
  %v254 = vmax.f32 %v190, 0.0
  %v255 = vmax.f32 %v191, 0.0
  %v256 = vmax.f32 %v192, 0.0
  %v257 = vmax.f32 %v193, 0.0
  %v258 = vmax.f32 %v194, 0.0
  %v259 = vmax.f32 %v195, 0.0
  %v260 = vmax.f32 %v196, 0.0
  %v261 = vmax.f32 %v197, 0.0
  %v262 = vmax.f32 %v198, 0.0
  %v263 = vmax.f32 %v199, 0.0
  %v264 = vmax.f32 %v200, 0.0
  %v265 = vmax.f32 %v201, 0.0
  %v266 = vmax.f32 %v202, 0.0
  %v267 = vmax.f32 %v203, 0.0
  %v268 = vmax.f32 %v204, 0.0
  %v269 = vmax.f32 %v205, 0.0
  %v270 = vmax.f32 %v206, 0.0
  %v271 = vmax.f32 %v207, 0.0
  %v272 = vmax.f32 %v208, 0.0
  %v273 = vmax.f32 %v209, 0.0
  %v274 = vmax.f32 %v210, 0.0
  %v275 = vmax.f32 %v211, 0.0
  %v276 = vmax.f32 %v212, 0.0
  %v277 = vmax.f32 %v213, 0.0
  %v278 = vmax.f32 %v214, 0.0
  %v279 = vmax.f32 %v215, 0.0
  %v280 = vmax.f32 %v216, 0.0
  %v281 = vmax.f32 %v217, 0.0
  %v282 = vmax.f32 %v218, 0.0
  %v283 = vmax.f32 %v219, 0.0
  %284 = vst [vmem:[%s3] sm:$0xff] %v220
  %285 = vst [vmem:[%s3 + $0x8] sm:$0xff] %v221
  %286 = vst [vmem:[%s3 + $0x10] sm:$0xff] %v222
  %287 = vst [vmem:[%s3 + $0x18] sm:$0xff] %v223
  %288 = vst [vmem:[%s3 + $0x20] sm:$0xff] %v224
  %289 = vst [vmem:[%s3 + $0x28] sm:$0xff] %v225
  %290 = vst [vmem:[%s3 + $0x30] sm:$0xff] %v226
  %291 = vst [vmem:[%s3 + $0x38] sm:$0xff] %v227
  %292 = vst [vmem:[%s3 + $0x40] sm:$0xff] %v228
  %293 = vst [vmem:[%s3 + $0x48] sm:$0xff] %v229
  %294 = vst [vmem:[%s3 + $0x50] sm:$0xff] %v230
  %295 = vst [vmem:[%s3 + $0x58] sm:$0xff] %v231
  %296 = vst [vmem:[%s3 + $0x60] sm:$0xff] %v232
  %297 = vst [vmem:[%s3 + $0x68] sm:$0xff] %v233
  %298 = vst [vmem:[%s3 + $0x70] sm:$0xff] %v234
  %299 = vst [vmem:[%s3 + $0x78] sm:$0xff] %v235
  %300 = vst [vmem:[%s3 + $0x80] sm:$0xff] %v236
  %301 = vst [vmem:[%s3 + $0x88] sm:$0xff] %v237
  %302 = vst [vmem:[%s3 + $0x90] sm:$0xff] %v238
  %303 = vst [vmem:[%s3 + $0x98] sm:$0xff] %v239
  %304 = vst [vmem:[%s3 + $0xa0] sm:$0xff] %v240
  %305 = vst [vmem:[%s3 + $0xa8] sm:$0xff] %v241
  %306 = vst [vmem:[%s3 + $0xb0] sm:$0xff] %v242
  %307 = vst [vmem:[%s3 + $0xb8] sm:$0xff] %v243
  %308 = vst [vmem:[%s3 + $0xc0] sm:$0xff] %v244
  %309 = vst [vmem:[%s3 + $0xc8] sm:$0xff] %v245
  %310 = vst [vmem:[%s3 + $0xd0] sm:$0xff] %v246
  %311 = vst [vmem:[%s3 + $0xd8] sm:$0xff] %v247
  %312 = vst [vmem:[%s3 + $0xe0] sm:$0xff] %v248
  %313 = vst [vmem:[%s3 + $0xe8] sm:$0xff] %v249
  %314 = vst [vmem:[%s3 + $0xf0] sm:$0xff] %v250
  %315 = vst [vmem:[%s3 + $0xf8] sm:$0xff] %v251
  %316 = vst [vmem:[%s3 + $0x100] sm:$0xff] %v252
  %317 = vst [vmem:[%s3 + $0x108] sm:$0xff] %v253
  %318 = vst [vmem:[%s3 + $0x110] sm:$0xff] %v254
  %319 = vst [vmem:[%s3 + $0x118] sm:$0xff] %v255
  %320 = vst [vmem:[%s3 + $0x120] sm:$0xff] %v256
  %321 = vst [vmem:[%s3 + $0x128] sm:$0xff] %v257
  %322 = vst [vmem:[%s3 + $0x130] sm:$0xff] %v258
  %323 = vst [vmem:[%s3 + $0x138] sm:$0xff] %v259
  %324 = vst [vmem:[%s3 + $0x140] sm:$0xff] %v260
  %325 = vst [vmem:[%s3 + $0x148] sm:$0xff] %v261
  %326 = vst [vmem:[%s3 + $0x150] sm:$0xff] %v262
  %327 = vst [vmem:[%s3 + $0x158] sm:$0xff] %v263
  %328 = vst [vmem:[%s3 + $0x160] sm:$0xff] %v264
  %329 = vst [vmem:[%s3 + $0x168] sm:$0xff] %v265
  %330 = vst [vmem:[%s3 + $0x170] sm:$0xff] %v266
  %331 = vst [vmem:[%s3 + $0x178] sm:$0xff] %v267
  %332 = vst [vmem:[%s3 + $0x180] sm:$0xff] %v268
  %333 = vst [vmem:[%s3 + $0x188] sm:$0xff] %v269
  %334 = vst [vmem:[%s3 + $0x190] sm:$0xff] %v270
  %335 = vst [vmem:[%s3 + $0x198] sm:$0xff] %v271
  %336 = vst [vmem:[%s3 + $0x1a0] sm:$0xff] %v272
  %337 = vst [vmem:[%s3 + $0x1a8] sm:$0xff] %v273
  %338 = vst [vmem:[%s3 + $0x1b0] sm:$0xff] %v274
  %339 = vst [vmem:[%s3 + $0x1b8] sm:$0xff] %v275
  %340 = vst [vmem:[%s3 + $0x1c0] sm:$0xff] %v276
  %341 = vst [vmem:[%s3 + $0x1c8] sm:$0xff] %v277
  %342 = vst [vmem:[%s3 + $0x1d0] sm:$0xff] %v278
  %343 = vst [vmem:[%s3 + $0x1d8] sm:$0xff] %v279
  %344 = vst [vmem:[%s3 + $0x1e0] sm:$0xff] %v280
  %345 = vst [vmem:[%s3 + $0x1e8] sm:$0xff] %v281
  %346 = vst [vmem:[%s3 + $0x1f0] sm:$0xff] %v282
  %347 = vst [vmem:[%s3 + $0x1f8] sm:$0xff] %v283
  // Predicated region
  $region14: #{basic_conv_apply.3} parent=0 // pred_check
    _
  $region15: #{basic_conv_apply.3} parent=0 // pred_check_branch
    %349 = sbr.rel (0) target = $region17
  $region16: #{basic_conv_apply.3} parent=0 // pred_region
    _
  $region17: #{basic_conv_apply.3} parent=0 // pred_fallthru
    _
  // Predicated region
  $region18: #{basic_conv_apply.3} parent=0 // pred_check
    _
  $region19: #{basic_conv_apply.3} parent=0 // pred_check_branch
    %351 = sbr.rel (0) target = $region21
  $region20: #{basic_conv_apply.3} parent=0 // pred_region
    _
  $region21: #{basic_conv_apply.3} parent=0 // pred_fallthru
    _

// kernel: basic_conv_apply.2
$region0: #{basic_conv_apply.2}
  #allocation0 [shape = 'u32[]', space=smem, size = 0x4, offset = 0x4, fixed_abs, tag = 'smem constant byte address 0x4 - core index']
  #allocation1 [shape = 'u32[144,128]{1,0:T(1,128)}', space=vmem, size = 0x12000, scoped, tag = 'internal scratch']
  %s0 = inlined_call_operand.vmem [shape: bf16[512,128], index: 0, kind: input, shape index: {}]
  %s1 = inlined_call_operand.vmem [shape: bf16[128,128], index: 1, kind: input, shape index: {}]
  %s2 = inlined_call_operand.vmem [shape: f32[1,128], index: 2, kind: input, shape index: {}]
  %s3 = inlined_call_operand.vmem [shape: f32[512,128], index: 3, kind: output, shape index: {}]
  %s4 = sld [smem:[#allocation0]]
  $region30: #{basic_conv_apply.2} parent=0
    _
  %s6 = ssub.s32 1, %s4
  %s7 = scalar_select 0, %s6, %s4
  // Predicated region
  $region2: #{basic_conv_apply.2} parent=0 // pred_check
    _
  $region3: #{basic_conv_apply.2} parent=0 // pred_check_branch
    %9 = sbr.rel (0) target = $region5
  $region4: #{basic_conv_apply.2} parent=0 // pred_region
    _
  $region5: #{basic_conv_apply.2} parent=0 // pred_fallthru
    _
  // Predicated region
  $region6: #{basic_conv_apply.2} parent=0 // pred_check
    _
  $region7: #{basic_conv_apply.2} parent=0 // pred_check_branch
    %11 = sbr.rel (0) target = $region9
  $region8: #{basic_conv_apply.2} parent=0 // pred_region
    _
  $region9: #{basic_conv_apply.2} parent=0 // pred_fallthru
    _
  // Predicated region
  $region10: #{basic_conv_apply.2} parent=0 // pred_check
    _
  $region11: #{basic_conv_apply.2} parent=0 // pred_check_branch
    %13 = sbr.rel (0) target = $region13
  $region12: #{basic_conv_apply.2} parent=0 // pred_region
    _
  $region13: #{basic_conv_apply.2} parent=0 // pred_fallthru
    _
  %p15 = scmp.eq.s32.totalorder 0, 0
  // Predicated region
  $region14: #{basic_conv_apply.2} parent=0 // pred_check
    %p16 = pneg %p15
  $region15: #{basic_conv_apply.2} parent=0 // pred_check_branch
    %18 = sbr.rel (%p16) target = $region17
  $region16: #{basic_conv_apply.2} parent=0 // pred_region
    %19 = vst [vmem:[%s3] sm:$0xff] 0.0
    %20 = vst [vmem:[%s3 + $0x8] sm:$0xff] 0.0
    %21 = vst [vmem:[%s3 + $0x10] sm:$0xff] 0.0
    %22 = vst [vmem:[%s3 + $0x18] sm:$0xff] 0.0
    %23 = vst [vmem:[%s3 + $0x20] sm:$0xff] 0.0
    %24 = vst [vmem:[%s3 + $0x28] sm:$0xff] 0.0
    %25 = vst [vmem:[%s3 + $0x30] sm:$0xff] 0.0
    %26 = vst [vmem:[%s3 + $0x38] sm:$0xff] 0.0
    %27 = vst [vmem:[%s3 + $0x40] sm:$0xff] 0.0
    %28 = vst [vmem:[%s3 + $0x48] sm:$0xff] 0.0
    %29 = vst [vmem:[%s3 + $0x50] sm:$0xff] 0.0
    %30 = vst [vmem:[%s3 + $0x58] sm:$0xff] 0.0
    %31 = vst [vmem:[%s3 + $0x60] sm:$0xff] 0.0
    %32 = vst [vmem:[%s3 + $0x68] sm:$0xff] 0.0
    %33 = vst [vmem:[%s3 + $0x70] sm:$0xff] 0.0
    %34 = vst [vmem:[%s3 + $0x78] sm:$0xff] 0.0
    %35 = vst [vmem:[%s3 + $0x80] sm:$0xff] 0.0
    %36 = vst [vmem:[%s3 + $0x88] sm:$0xff] 0.0
    %37 = vst [vmem:[%s3 + $0x90] sm:$0xff] 0.0
    %38 = vst [vmem:[%s3 + $0x98] sm:$0xff] 0.0
    %39 = vst [vmem:[%s3 + $0xa0] sm:$0xff] 0.0
    %40 = vst [vmem:[%s3 + $0xa8] sm:$0xff] 0.0
    %41 = vst [vmem:[%s3 + $0xb0] sm:$0xff] 0.0
    %42 = vst [vmem:[%s3 + $0xb8] sm:$0xff] 0.0
    %43 = vst [vmem:[%s3 + $0xc0] sm:$0xff] 0.0
    %44 = vst [vmem:[%s3 + $0xc8] sm:$0xff] 0.0
    %45 = vst [vmem:[%s3 + $0xd0] sm:$0xff] 0.0
    %46 = vst [vmem:[%s3 + $0xd8] sm:$0xff] 0.0
    %47 = vst [vmem:[%s3 + $0xe0] sm:$0xff] 0.0
    %48 = vst [vmem:[%s3 + $0xe8] sm:$0xff] 0.0
    %49 = vst [vmem:[%s3 + $0xf0] sm:$0xff] 0.0
    %50 = vst [vmem:[%s3 + $0xf8] sm:$0xff] 0.0
    %51 = vst [vmem:[%s3 + $0x100] sm:$0xff] 0.0
    %52 = vst [vmem:[%s3 + $0x108] sm:$0xff] 0.0
    %53 = vst [vmem:[%s3 + $0x110] sm:$0xff] 0.0
    %54 = vst [vmem:[%s3 + $0x118] sm:$0xff] 0.0
    %55 = vst [vmem:[%s3 + $0x120] sm:$0xff] 0.0
    %56 = vst [vmem:[%s3 + $0x128] sm:$0xff] 0.0
    %57 = vst [vmem:[%s3 + $0x130] sm:$0xff] 0.0
    %58 = vst [vmem:[%s3 + $0x138] sm:$0xff] 0.0
    %59 = vst [vmem:[%s3 + $0x140] sm:$0xff] 0.0
    %60 = vst [vmem:[%s3 + $0x148] sm:$0xff] 0.0
    %61 = vst [vmem:[%s3 + $0x150] sm:$0xff] 0.0
    %62 = vst [vmem:[%s3 + $0x158] sm:$0xff] 0.0
    %63 = vst [vmem:[%s3 + $0x160] sm:$0xff] 0.0
    %64 = vst [vmem:[%s3 + $0x168] sm:$0xff] 0.0
    %65 = vst [vmem:[%s3 + $0x170] sm:$0xff] 0.0
    %66 = vst [vmem:[%s3 + $0x178] sm:$0xff] 0.0
    %67 = vst [vmem:[%s3 + $0x180] sm:$0xff] 0.0
    %68 = vst [vmem:[%s3 + $0x188] sm:$0xff] 0.0
    %69 = vst [vmem:[%s3 + $0x190] sm:$0xff] 0.0
    %70 = vst [vmem:[%s3 + $0x198] sm:$0xff] 0.0
    %71 = vst [vmem:[%s3 + $0x1a0] sm:$0xff] 0.0
    %72 = vst [vmem:[%s3 + $0x1a8] sm:$0xff] 0.0
    %73 = vst [vmem:[%s3 + $0x1b0] sm:$0xff] 0.0
    %74 = vst [vmem:[%s3 + $0x1b8] sm:$0xff] 0.0
    %75 = vst [vmem:[%s3 + $0x1c0] sm:$0xff] 0.0
    %76 = vst [vmem:[%s3 + $0x1c8] sm:$0xff] 0.0
    %77 = vst [vmem:[%s3 + $0x1d0] sm:$0xff] 0.0
    %78 = vst [vmem:[%s3 + $0x1d8] sm:$0xff] 0.0
    %79 = vst [vmem:[%s3 + $0x1e0] sm:$0xff] 0.0
    %80 = vst [vmem:[%s3 + $0x1e8] sm:$0xff] 0.0
    %81 = vst [vmem:[%s3 + $0x1f0] sm:$0xff] 0.0
    %82 = vst [vmem:[%s3 + $0x1f8] sm:$0xff] 0.0
  $region17: #{basic_conv_apply.2} parent=0 // pred_fallthru
    _
  %v83 = vld [vmem:[%s3] sm:$0xff]
  %v84 = vld [vmem:[%s3 + $0x8] sm:$0xff]
  %v85 = vld [vmem:[%s3 + $0x10] sm:$0xff]
  %v86 = vld [vmem:[%s3 + $0x18] sm:$0xff]
  %v87 = vld [vmem:[%s3 + $0x20] sm:$0xff]
  %v88 = vld [vmem:[%s3 + $0x28] sm:$0xff]
  %v89 = vld [vmem:[%s3 + $0x30] sm:$0xff]
  %v90 = vld [vmem:[%s3 + $0x38] sm:$0xff]
  %v91 = vld [vmem:[%s3 + $0x40] sm:$0xff]
  %v92 = vld [vmem:[%s3 + $0x48] sm:$0xff]
  %v93 = vld [vmem:[%s3 + $0x50] sm:$0xff]
  %v94 = vld [vmem:[%s3 + $0x58] sm:$0xff]
  %v95 = vld [vmem:[%s3 + $0x60] sm:$0xff]
  %v96 = vld [vmem:[%s3 + $0x68] sm:$0xff]
  %v97 = vld [vmem:[%s3 + $0x70] sm:$0xff]
  %v98 = vld [vmem:[%s3 + $0x78] sm:$0xff]
  %v99 = vld [vmem:[%s3 + $0x80] sm:$0xff]
  %v100 = vld [vmem:[%s3 + $0x88] sm:$0xff]
  %v101 = vld [vmem:[%s3 + $0x90] sm:$0xff]
  %v102 = vld [vmem:[%s3 + $0x98] sm:$0xff]
  %v103 = vld [vmem:[%s3 + $0xa0] sm:$0xff]
  %v104 = vld [vmem:[%s3 + $0xa8] sm:$0xff]
  %v105 = vld [vmem:[%s3 + $0xb0] sm:$0xff]
  %v106 = vld [vmem:[%s3 + $0xb8] sm:$0xff]
  %v107 = vld [vmem:[%s3 + $0xc0] sm:$0xff]
  %v108 = vld [vmem:[%s3 + $0xc8] sm:$0xff]
  %v109 = vld [vmem:[%s3 + $0xd0] sm:$0xff]
  %v110 = vld [vmem:[%s3 + $0xd8] sm:$0xff]
  %v111 = vld [vmem:[%s3 + $0xe0] sm:$0xff]
  %v112 = vld [vmem:[%s3 + $0xe8] sm:$0xff]
  %v113 = vld [vmem:[%s3 + $0xf0] sm:$0xff]
  %v114 = vld [vmem:[%s3 + $0xf8] sm:$0xff]
  %v115 = vld [vmem:[%s3 + $0x100] sm:$0xff]
  %v116 = vld [vmem:[%s3 + $0x108] sm:$0xff]
  %v117 = vld [vmem:[%s3 + $0x110] sm:$0xff]
  %v118 = vld [vmem:[%s3 + $0x118] sm:$0xff]
  %v119 = vld [vmem:[%s3 + $0x120] sm:$0xff]
  %v120 = vld [vmem:[%s3 + $0x128] sm:$0xff]
  %v121 = vld [vmem:[%s3 + $0x130] sm:$0xff]
  %v122 = vld [vmem:[%s3 + $0x138] sm:$0xff]
  %v123 = vld [vmem:[%s3 + $0x140] sm:$0xff]
  %v124 = vld [vmem:[%s3 + $0x148] sm:$0xff]
  %v125 = vld [vmem:[%s3 + $0x150] sm:$0xff]
  %v126 = vld [vmem:[%s3 + $0x158] sm:$0xff]
  %v127 = vld [vmem:[%s3 + $0x160] sm:$0xff]
  %v128 = vld [vmem:[%s3 + $0x168] sm:$0xff]
  %v129 = vld [vmem:[%s3 + $0x170] sm:$0xff]
  %v130 = vld [vmem:[%s3 + $0x178] sm:$0xff]
  %v131 = vld [vmem:[%s3 + $0x180] sm:$0xff]
  %v132 = vld [vmem:[%s3 + $0x188] sm:$0xff]
  %v133 = vld [vmem:[%s3 + $0x190] sm:$0xff]
  %v134 = vld [vmem:[%s3 + $0x198] sm:$0xff]
  %v135 = vld [vmem:[%s3 + $0x1a0] sm:$0xff]
  %v136 = vld [vmem:[%s3 + $0x1a8] sm:$0xff]
  %v137 = vld [vmem:[%s3 + $0x1b0] sm:$0xff]
  %v138 = vld [vmem:[%s3 + $0x1b8] sm:$0xff]
  %v139 = vld [vmem:[%s3 + $0x1c0] sm:$0xff]
  %v140 = vld [vmem:[%s3 + $0x1c8] sm:$0xff]
  %v141 = vld [vmem:[%s3 + $0x1d0] sm:$0xff]
  %v142 = vld [vmem:[%s3 + $0x1d8] sm:$0xff]
  %v143 = vld [vmem:[%s3 + $0x1e0] sm:$0xff]
  %v144 = vld [vmem:[%s3 + $0x1e8] sm:$0xff]
  %v145 = vld [vmem:[%s3 + $0x1f0] sm:$0xff]
  %v146 = vld [vmem:[%s3 + $0x1f8] sm:$0xff]
  %v147 = vld [vmem:[%s0] sm:$0xf]
  %v148 = vld [vmem:[%s0 + $0x4] sm:$0xf]
  %v149 = vld [vmem:[%s0 + $0x8] sm:$0xf]
  %v150 = vld [vmem:[%s0 + $0xc] sm:$0xf]
  %v151 = vld [vmem:[%s0 + $0x10] sm:$0xf]
  %v152 = vld [vmem:[%s0 + $0x14] sm:$0xf]
  %v153 = vld [vmem:[%s0 + $0x18] sm:$0xf]
  %v154 = vld [vmem:[%s0 + $0x1c] sm:$0xf]
  %v155 = vld [vmem:[%s0 + $0x20] sm:$0xf]
  %v156 = vld [vmem:[%s0 + $0x24] sm:$0xf]
  %v157 = vld [vmem:[%s0 + $0x28] sm:$0xf]
  %v158 = vld [vmem:[%s0 + $0x2c] sm:$0xf]
  %v159 = vld [vmem:[%s0 + $0x30] sm:$0xf]
  %v160 = vld [vmem:[%s0 + $0x34] sm:$0xf]
  %v161 = vld [vmem:[%s0 + $0x38] sm:$0xf]
  %v162 = vld [vmem:[%s0 + $0x3c] sm:$0xf]
  %v163 = vld [vmem:[%s0 + $0x40] sm:$0xf]
  %v164 = vld [vmem:[%s0 + $0x44] sm:$0xf]
  %v165 = vld [vmem:[%s0 + $0x48] sm:$0xf]
  %v166 = vld [vmem:[%s0 + $0x4c] sm:$0xf]
  %v167 = vld [vmem:[%s0 + $0x50] sm:$0xf]
  %v168 = vld [vmem:[%s0 + $0x54] sm:$0xf]
  %v169 = vld [vmem:[%s0 + $0x58] sm:$0xf]
  %v170 = vld [vmem:[%s0 + $0x5c] sm:$0xf]
  %v171 = vld [vmem:[%s0 + $0x60] sm:$0xf]
  %v172 = vld [vmem:[%s0 + $0x64] sm:$0xf]
  %v173 = vld [vmem:[%s0 + $0x68] sm:$0xf]
  %v174 = vld [vmem:[%s0 + $0x6c] sm:$0xf]
  %v175 = vld [vmem:[%s0 + $0x70] sm:$0xf]
  %v176 = vld [vmem:[%s0 + $0x74] sm:$0xf]
  %v177 = vld [vmem:[%s0 + $0x78] sm:$0xf]
  %v178 = vld [vmem:[%s0 + $0x7c] sm:$0xf]
  %v179 = vld [vmem:[%s0 + $0x80] sm:$0xf]
  %v180 = vld [vmem:[%s0 + $0x84] sm:$0xf]
  %v181 = vld [vmem:[%s0 + $0x88] sm:$0xf]
  %v182 = vld [vmem:[%s0 + $0x8c] sm:$0xf]
  %v183 = vld [vmem:[%s0 + $0x90] sm:$0xf]
  %v184 = vld [vmem:[%s0 + $0x94] sm:$0xf]
  %v185 = vld [vmem:[%s0 + $0x98] sm:$0xf]
  %v186 = vld [vmem:[%s0 + $0x9c] sm:$0xf]
  %v187 = vld [vmem:[%s0 + $0xa0] sm:$0xf]
  %v188 = vld [vmem:[%s0 + $0xa4] sm:$0xf]
  %v189 = vld [vmem:[%s0 + $0xa8] sm:$0xf]
  %v190 = vld [vmem:[%s0 + $0xac] sm:$0xf]
  %v191 = vld [vmem:[%s0 + $0xb0] sm:$0xf]
  %v192 = vld [vmem:[%s0 + $0xb4] sm:$0xf]
  %v193 = vld [vmem:[%s0 + $0xb8] sm:$0xf]
  %v194 = vld [vmem:[%s0 + $0xbc] sm:$0xf]
  %v195 = vld [vmem:[%s0 + $0xc0] sm:$0xf]
  %v196 = vld [vmem:[%s0 + $0xc4] sm:$0xf]
  %v197 = vld [vmem:[%s0 + $0xc8] sm:$0xf]
  %v198 = vld [vmem:[%s0 + $0xcc] sm:$0xf]
  %v199 = vld [vmem:[%s0 + $0xd0] sm:$0xf]
  %v200 = vld [vmem:[%s0 + $0xd4] sm:$0xf]
  %v201 = vld [vmem:[%s0 + $0xd8] sm:$0xf]
  %v202 = vld [vmem:[%s0 + $0xdc] sm:$0xf]
  %v203 = vld [vmem:[%s0 + $0xe0] sm:$0xf]
  %v204 = vld [vmem:[%s0 + $0xe4] sm:$0xf]
  %v205 = vld [vmem:[%s0 + $0xe8] sm:$0xf]
  %v206 = vld [vmem:[%s0 + $0xec] sm:$0xf]
  %v207 = vld [vmem:[%s0 + $0xf0] sm:$0xf]
  %v208 = vld [vmem:[%s0 + $0xf4] sm:$0xf]
  %v209 = vld [vmem:[%s0 + $0xf8] sm:$0xf]
  %v210 = vld [vmem:[%s0 + $0xfc] sm:$0xf]
  %v211 = vld [vmem:[%s1] sm:$0xf]
  %v212 = vld [vmem:[%s1 + $0x4] sm:$0xf]
  %v213 = vld [vmem:[%s1 + $0x8] sm:$0xf]
  %v214 = vld [vmem:[%s1 + $0xc] sm:$0xf]
  %v215 = vld [vmem:[%s1 + $0x10] sm:$0xf]
  %v216 = vld [vmem:[%s1 + $0x14] sm:$0xf]
  %v217 = vld [vmem:[%s1 + $0x18] sm:$0xf]
  %v218 = vld [vmem:[%s1 + $0x1c] sm:$0xf]
  %v219 = vld [vmem:[%s1 + $0x20] sm:$0xf]
  %v220 = vld [vmem:[%s1 + $0x24] sm:$0xf]
  %v221 = vld [vmem:[%s1 + $0x28] sm:$0xf]
  %v222 = vld [vmem:[%s1 + $0x2c] sm:$0xf]
  %v223 = vld [vmem:[%s1 + $0x30] sm:$0xf]
  %v224 = vld [vmem:[%s1 + $0x34] sm:$0xf]
  %v225 = vld [vmem:[%s1 + $0x38] sm:$0xf]
  %v226 = vld [vmem:[%s1 + $0x3c] sm:$0xf]
  %v291 = vunpack.c.l.b16 %v147
  %v292 = vunpack.c.l.b16 %v148
  %v293 = vunpack.c.l.b16 %v149
  %v294 = vunpack.c.l.b16 %v150
  %v295 = vunpack.c.l.b16 %v151
  %v296 = vunpack.c.l.b16 %v152
  %v297 = vunpack.c.l.b16 %v153
  %v298 = vunpack.c.l.b16 %v154
  %v299 = vunpack.c.l.b16 %v155
  %v300 = vunpack.c.l.b16 %v156
  %v301 = vunpack.c.l.b16 %v157
  %v302 = vunpack.c.l.b16 %v158
  %v303 = vunpack.c.l.b16 %v159
  %v304 = vunpack.c.l.b16 %v160
  %v305 = vunpack.c.l.b16 %v161
  %v306 = vunpack.c.l.b16 %v162
  %v307 = vunpack.c.l.b16 %v163
  %v308 = vunpack.c.l.b16 %v164
  %v309 = vunpack.c.l.b16 %v165
  %v310 = vunpack.c.l.b16 %v166
  %v311 = vunpack.c.l.b16 %v167
  %v312 = vunpack.c.l.b16 %v168
  %v313 = vunpack.c.l.b16 %v169
  %v314 = vunpack.c.l.b16 %v170
  %v315 = vunpack.c.l.b16 %v171
  %v316 = vunpack.c.l.b16 %v172
  %v317 = vunpack.c.l.b16 %v173
  %v318 = vunpack.c.l.b16 %v174
  %v319 = vunpack.c.l.b16 %v175
  %v320 = vunpack.c.l.b16 %v176
  %v321 = vunpack.c.l.b16 %v177
  %v322 = vunpack.c.l.b16 %v178
  %v323 = vunpack.c.l.b16 %v179
  %v324 = vunpack.c.l.b16 %v180
  %v325 = vunpack.c.l.b16 %v181
  %v326 = vunpack.c.l.b16 %v182
  %v327 = vunpack.c.l.b16 %v183
  %v328 = vunpack.c.l.b16 %v184
  %v329 = vunpack.c.l.b16 %v185
  %v330 = vunpack.c.l.b16 %v186
  %v331 = vunpack.c.l.b16 %v187
  %v332 = vunpack.c.l.b16 %v188
  %v333 = vunpack.c.l.b16 %v189
  %v334 = vunpack.c.l.b16 %v190
  %v335 = vunpack.c.l.b16 %v191
  %v336 = vunpack.c.l.b16 %v192
  %v337 = vunpack.c.l.b16 %v193
  %v338 = vunpack.c.l.b16 %v194
  %v339 = vunpack.c.l.b16 %v195
  %v340 = vunpack.c.l.b16 %v196
  %v341 = vunpack.c.l.b16 %v197
  %v342 = vunpack.c.l.b16 %v198
  %v343 = vunpack.c.l.b16 %v199
  %v344 = vunpack.c.l.b16 %v200
  %v345 = vunpack.c.l.b16 %v201
  %v346 = vunpack.c.l.b16 %v202
  %v347 = vunpack.c.l.b16 %v203
  %v348 = vunpack.c.l.b16 %v204
  %v349 = vunpack.c.l.b16 %v205
  %v350 = vunpack.c.l.b16 %v206
  %v351 = vunpack.c.l.b16 %v207
  %v352 = vunpack.c.l.b16 %v208
  %v353 = vunpack.c.l.b16 %v209
  %v354 = vunpack.c.l.b16 %v210
  %v355 = vpack.c.b16 %v292, %v291
  %v356 = vpack.c.b16 %v294, %v293
  %v357 = vpack.c.b16 %v296, %v295
  %v358 = vpack.c.b16 %v298, %v297
  %v359 = vpack.c.b16 %v300, %v299
  %v360 = vpack.c.b16 %v302, %v301
  %v361 = vpack.c.b16 %v304, %v303
  %v362 = vpack.c.b16 %v306, %v305
  %v363 = vpack.c.b16 %v308, %v307
  %v364 = vpack.c.b16 %v310, %v309
  %v365 = vpack.c.b16 %v312, %v311
  %v366 = vpack.c.b16 %v314, %v313
  %v367 = vpack.c.b16 %v316, %v315
  %v368 = vpack.c.b16 %v318, %v317
  %v369 = vpack.c.b16 %v320, %v319
  %v370 = vpack.c.b16 %v322, %v321
  %v371 = vpack.c.b16 %v324, %v323
  %v372 = vpack.c.b16 %v326, %v325
  %v373 = vpack.c.b16 %v328, %v327
  %v374 = vpack.c.b16 %v330, %v329
  %v375 = vpack.c.b16 %v332, %v331
  %v376 = vpack.c.b16 %v334, %v333
  %v377 = vpack.c.b16 %v336, %v335
  %v378 = vpack.c.b16 %v338, %v337
  %v379 = vpack.c.b16 %v340, %v339
  %v380 = vpack.c.b16 %v342, %v341
  %v381 = vpack.c.b16 %v344, %v343
  %v382 = vpack.c.b16 %v346, %v345
  %v383 = vpack.c.b16 %v348, %v347
  %v384 = vpack.c.b16 %v350, %v349
  %v385 = vpack.c.b16 %v352, %v351
  %v386 = vpack.c.b16 %v354, %v353
  %v435 = vunpack.c.l.b16 %v211
  %v436 = vunpack.c.l.b16 %v212
  %v437 = vunpack.c.l.b16 %v213
  %v438 = vunpack.c.l.b16 %v214
  %v439 = vunpack.c.l.b16 %v215
  %v440 = vunpack.c.l.b16 %v216
  %v441 = vunpack.c.l.b16 %v217
  %v442 = vunpack.c.l.b16 %v218
  %v443 = vunpack.c.l.b16 %v219
  %v444 = vunpack.c.l.b16 %v220
  %v445 = vunpack.c.l.b16 %v221
  %v446 = vunpack.c.l.b16 %v222
  %v447 = vunpack.c.l.b16 %v223
  %v448 = vunpack.c.l.b16 %v224
  %v449 = vunpack.c.l.b16 %v225
  %v450 = vunpack.c.l.b16 %v226
  %v451 = vpack.c.b16 %v436, %v435
  %v452 = vpack.c.b16 %v438, %v437
  %v453 = vpack.c.b16 %v440, %v439
  %v454 = vpack.c.b16 %v442, %v441
  %v455 = vpack.c.b16 %v444, %v443
  %v456 = vpack.c.b16 %v446, %v445
  %v457 = vpack.c.b16 %v448, %v447
  %v458 = vpack.c.b16 %v450, %v449
  %467 = vmatprep.subr.bf16.mxu0 0
  %468 = vmatpush1.bf16.msra.mxu0 %v451
  %469 = vmatprep.subr.bf16.mxu0 0
  %470 = vmatpush1.bf16.msra.mxu0 %v452
  %471 = vmatprep.subr.bf16.mxu0 0
  %472 = vmatpush1.bf16.msra.mxu0 %v453
  %473 = vmatprep.subr.bf16.mxu0 0
  %474 = vmatpush1.bf16.msra.mxu0 %v454
  %475 = vmatprep.subr.bf16.mxu0 0
  %476 = vmatpush1.bf16.msra.mxu0 %v455
  %477 = vmatprep.subr.bf16.mxu0 0
  %478 = vmatpush1.bf16.msra.mxu0 %v456
  %479 = vmatprep.subr.bf16.mxu0 0
  %480 = vmatpush1.bf16.msra.mxu0 %v457
  %481 = vmatprep.subr.bf16.mxu0 0
  %482 = vmatpush1.bf16.msra.mxu0 %v458
  %483 = vmatprep.subr.bf16.mxu0 0
  %484 = vmatpush1.bf16.msra.mxu0 0
  %485 = vmatprep.subr.bf16.mxu0 0
  %486 = vmatpush1.bf16.msra.mxu0 0
  %487 = vmatprep.subr.bf16.mxu0 0
  %488 = vmatpush1.bf16.msra.mxu0 0
  %489 = vmatprep.subr.bf16.mxu0 0
  %490 = vmatpush1.bf16.msra.mxu0 0
  %491 = vmatprep.subr.bf16.mxu0 0
  %492 = vmatpush1.bf16.msra.mxu0 0
  %493 = vmatprep.subr.bf16.mxu0 0
  %494 = vmatpush1.bf16.msra.mxu0 0
  %495 = vmatprep.subr.bf16.mxu0 0
  %496 = vmatpush1.bf16.msra.mxu0 0
  %497 = vmatprep.subr.bf16.mxu0 0
  %498 = vmatpush1.bf16.msra.mxu0 0
  %499 = vmatprep.mubr.bf16.mxu0 0
  %500 = vmatmul.mubr.bf16.gmra.mrb[0].mxu0 %v355
  %v501 = vpop.f32.mrb[0].mxu0
  %v502 = vadd.f32 0.0, %v501
  %v503 = vpop.f32.mrb[0].mxu0
  %v504 = vpop.f32.mrb[0].mxu0
  %v505 = vadd.f32 0.0, %v504
  %v506 = vpop.f32.mrb[0].mxu0
  %507 = vmatprep.mubr.bf16.mxu0 0
  %508 = vmatmul.mubr.bf16.gmra.mrb[0].mxu0 %v356
  %v509 = vpop.f32.mrb[0].mxu0
  %v510 = vadd.f32 0.0, %v509
  %v511 = vpop.f32.mrb[0].mxu0
  %v512 = vpop.f32.mrb[0].mxu0
  %v513 = vadd.f32 0.0, %v512
  %v514 = vpop.f32.mrb[0].mxu0
  %515 = vmatprep.mubr.bf16.mxu0 0
  %516 = vmatmul.mubr.bf16.gmra.mrb[0].mxu0 %v357
  %v517 = vpop.f32.mrb[0].mxu0
  %v518 = vadd.f32 0.0, %v517
  %v519 = vpop.f32.mrb[0].mxu0
  %v520 = vpop.f32.mrb[0].mxu0
  %v521 = vadd.f32 0.0, %v520
  %v522 = vpop.f32.mrb[0].mxu0
  %523 = vmatprep.mubr.bf16.mxu0 0
  %524 = vmatmul.mubr.bf16.gmra.mrb[0].mxu0 %v358
  %v525 = vpop.f32.mrb[0].mxu0
  %v526 = vadd.f32 0.0, %v525
  %v527 = vpop.f32.mrb[0].mxu0
  %v528 = vpop.f32.mrb[0].mxu0
  %v529 = vadd.f32 0.0, %v528
  %v530 = vpop.f32.mrb[0].mxu0
  %531 = vmatprep.mubr.bf16.mxu0 0
  %532 = vmatmul.mubr.bf16.gmra.mrb[0].mxu0 %v359
  %v533 = vpop.f32.mrb[0].mxu0
  %v534 = vadd.f32 0.0, %v533
  %v535 = vpop.f32.mrb[0].mxu0
  %v536 = vpop.f32.mrb[0].mxu0
  %v537 = vadd.f32 0.0, %v536
  %v538 = vpop.f32.mrb[0].mxu0
  %539 = vmatprep.mubr.bf16.mxu0 0
  %540 = vmatmul.mubr.bf16.gmra.mrb[0].mxu0 %v360
  %v541 = vpop.f32.mrb[0].mxu0
  %v542 = vadd.f32 0.0, %v541
  %v543 = vpop.f32.mrb[0].mxu0
  %v544 = vpop.f32.mrb[0].mxu0
  %v545 = vadd.f32 0.0, %v544
  %v546 = vpop.f32.mrb[0].mxu0
  %547 = vmatprep.mubr.bf16.mxu0 0
  %548 = vmatmul.mubr.bf16.gmra.mrb[0].mxu0 %v361
  %v549 = vpop.f32.mrb[0].mxu0
  %v550 = vadd.f32 0.0, %v549
  %v551 = vpop.f32.mrb[0].mxu0
  %v552 = vpop.f32.mrb[0].mxu0
  %v553 = vadd.f32 0.0, %v552
  %v554 = vpop.f32.mrb[0].mxu0
  %555 = vmatprep.mubr.bf16.mxu0 0
  %556 = vmatmul.mubr.bf16.gmra.mrb[0].mxu0 %v362
  %v557 = vpop.f32.mrb[0].mxu0
  %v558 = vadd.f32 0.0, %v557
  %v559 = vpop.f32.mrb[0].mxu0
  %v560 = vpop.f32.mrb[0].mxu0
  %v561 = vadd.f32 0.0, %v560
  %v562 = vpop.f32.mrb[0].mxu0
  %563 = vmatprep.mubr.bf16.mxu0 0
  %564 = vmatmul.mubr.bf16.gmra.mrb[0].mxu0 %v363
  %v565 = vpop.f32.mrb[0].mxu0
  %v566 = vadd.f32 0.0, %v565
  %v567 = vpop.f32.mrb[0].mxu0
  %v568 = vpop.f32.mrb[0].mxu0
  %v569 = vadd.f32 0.0, %v568
  %v570 = vpop.f32.mrb[0].mxu0
  %571 = vmatprep.mubr.bf16.mxu0 0
  %572 = vmatmul.mubr.bf16.gmra.mrb[0].mxu0 %v364
  %v573 = vpop.f32.mrb[0].mxu0
  %v574 = vadd.f32 0.0, %v573
  %v575 = vpop.f32.mrb[0].mxu0
  %v576 = vpop.f32.mrb[0].mxu0
  %v577 = vadd.f32 0.0, %v576
  %v578 = vpop.f32.mrb[0].mxu0
  %579 = vmatprep.mubr.bf16.mxu0 0
  %580 = vmatmul.mubr.bf16.gmra.mrb[0].mxu0 %v365
  %v581 = vpop.f32.mrb[0].mxu0
  %v582 = vadd.f32 0.0, %v581
  %v583 = vpop.f32.mrb[0].mxu0
  %v584 = vpop.f32.mrb[0].mxu0
  %v585 = vadd.f32 0.0, %v584
  %v586 = vpop.f32.mrb[0].mxu0
  %587 = vmatprep.mubr.bf16.mxu0 0
  %588 = vmatmul.mubr.bf16.gmra.mrb[0].mxu0 %v366
  %v589 = vpop.f32.mrb[0].mxu0
  %v590 = vadd.f32 0.0, %v589
  %v591 = vpop.f32.mrb[0].mxu0
  %v592 = vpop.f32.mrb[0].mxu0
  %v593 = vadd.f32 0.0, %v592
  %v594 = vpop.f32.mrb[0].mxu0
  %595 = vmatprep.mubr.bf16.mxu0 0
  %596 = vmatmul.mubr.bf16.gmra.mrb[0].mxu0 %v367
  %v597 = vpop.f32.mrb[0].mxu0
  %v598 = vadd.f32 0.0, %v597
  %v599 = vpop.f32.mrb[0].mxu0
  %v600 = vpop.f32.mrb[0].mxu0
  %v601 = vadd.f32 0.0, %v600
  %v602 = vpop.f32.mrb[0].mxu0
  %603 = vmatprep.mubr.bf16.mxu0 0
  %604 = vmatmul.mubr.bf16.gmra.mrb[0].mxu0 %v368
  %v605 = vpop.f32.mrb[0].mxu0
  %v606 = vadd.f32 0.0, %v605
  %v607 = vpop.f32.mrb[0].mxu0
  %v608 = vpop.f32.mrb[0].mxu0
  %v609 = vadd.f32 0.0, %v608
  %v610 = vpop.f32.mrb[0].mxu0
  %611 = vmatprep.mubr.bf16.mxu0 0
  %612 = vmatmul.mubr.bf16.gmra.mrb[0].mxu0 %v369
  %v613 = vpop.f32.mrb[0].mxu0
  %v614 = vadd.f32 0.0, %v613
  %v615 = vpop.f32.mrb[0].mxu0
  %v616 = vpop.f32.mrb[0].mxu0
  %v617 = vadd.f32 0.0, %v616
  %v618 = vpop.f32.mrb[0].mxu0
  %619 = vmatprep.mubr.bf16.mxu0 0
  %620 = vmatmul.mubr.bf16.gmra.mrb[0].mxu0 %v370
  %v621 = vpop.f32.mrb[0].mxu0
  %v622 = vadd.f32 0.0, %v621
  %v623 = vpop.f32.mrb[0].mxu0
  %v624 = vpop.f32.mrb[0].mxu0
  %v625 = vadd.f32 0.0, %v624
  %v626 = vpop.f32.mrb[0].mxu0
  %627 = vmatprep.mubr.bf16.mxu0 0
  %628 = vmatmul.mubr.bf16.gmra.mrb[0].mxu0 %v371
  %v629 = vpop.f32.mrb[0].mxu0
  %v630 = vadd.f32 0.0, %v629
  %v631 = vpop.f32.mrb[0].mxu0
  %v632 = vpop.f32.mrb[0].mxu0
  %v633 = vadd.f32 0.0, %v632
  %v634 = vpop.f32.mrb[0].mxu0
  %635 = vmatprep.mubr.bf16.mxu0 0
  %636 = vmatmul.mubr.bf16.gmra.mrb[0].mxu0 %v372
  %v637 = vpop.f32.mrb[0].mxu0
  %v638 = vadd.f32 0.0, %v637
  %v639 = vpop.f32.mrb[0].mxu0
  %v640 = vpop.f32.mrb[0].mxu0
  %v641 = vadd.f32 0.0, %v640
  %v642 = vpop.f32.mrb[0].mxu0
  %643 = vmatprep.mubr.bf16.mxu0 0
  %644 = vmatmul.mubr.bf16.gmra.mrb[0].mxu0 %v373
  %v645 = vpop.f32.mrb[0].mxu0
  %v646 = vadd.f32 0.0, %v645
  %v647 = vpop.f32.mrb[0].mxu0
  %v648 = vpop.f32.mrb[0].mxu0
  %v649 = vadd.f32 0.0, %v648
  %v650 = vpop.f32.mrb[0].mxu0
  %651 = vmatprep.mubr.bf16.mxu0 0
  %652 = vmatmul.mubr.bf16.gmra.mrb[0].mxu0 %v374
  %v653 = vpop.f32.mrb[0].mxu0
  %v654 = vadd.f32 0.0, %v653
  %v655 = vpop.f32.mrb[0].mxu0
  %v656 = vpop.f32.mrb[0].mxu0
  %v657 = vadd.f32 0.0, %v656
  %v658 = vpop.f32.mrb[0].mxu0
  %659 = vmatprep.mubr.bf16.mxu0 0
  %660 = vmatmul.mubr.bf16.gmra.mrb[0].mxu0 %v375
  %v661 = vpop.f32.mrb[0].mxu0
  %v662 = vadd.f32 0.0, %v661
  %v663 = vpop.f32.mrb[0].mxu0
  %v664 = vpop.f32.mrb[0].mxu0
  %v665 = vadd.f32 0.0, %v664
  %v666 = vpop.f32.mrb[0].mxu0
  %667 = vmatprep.mubr.bf16.mxu0 0
  %668 = vmatmul.mubr.bf16.gmra.mrb[0].mxu0 %v376
  %v669 = vpop.f32.mrb[0].mxu0
  %v670 = vadd.f32 0.0, %v669
  %v671 = vpop.f32.mrb[0].mxu0
  %v672 = vpop.f32.mrb[0].mxu0
  %v673 = vadd.f32 0.0, %v672
  %v674 = vpop.f32.mrb[0].mxu0
  %675 = vmatprep.mubr.bf16.mxu0 0
  %676 = vmatmul.mubr.bf16.gmra.mrb[0].mxu0 %v377
  %v677 = vpop.f32.mrb[0].mxu0
  %v678 = vadd.f32 0.0, %v677
  %v679 = vpop.f32.mrb[0].mxu0
  %v680 = vpop.f32.mrb[0].mxu0
  %v681 = vadd.f32 0.0, %v680
  %v682 = vpop.f32.mrb[0].mxu0
  %683 = vmatprep.mubr.bf16.mxu0 0
  %684 = vmatmul.mubr.bf16.gmra.mrb[0].mxu0 %v378
  %v685 = vpop.f32.mrb[0].mxu0
  %v686 = vadd.f32 0.0, %v685
  %v687 = vpop.f32.mrb[0].mxu0
  %v688 = vpop.f32.mrb[0].mxu0
  %v689 = vadd.f32 0.0, %v688
  %v690 = vpop.f32.mrb[0].mxu0
  %691 = vmatprep.mubr.bf16.mxu0 0
  %692 = vmatmul.mubr.bf16.gmra.mrb[0].mxu0 %v379
  %v693 = vpop.f32.mrb[0].mxu0
  %v694 = vadd.f32 0.0, %v693
  %v695 = vpop.f32.mrb[0].mxu0
  %v696 = vpop.f32.mrb[0].mxu0
  %v697 = vadd.f32 0.0, %v696
  %v698 = vpop.f32.mrb[0].mxu0
  %699 = vmatprep.mubr.bf16.mxu0 0
  %700 = vmatmul.mubr.bf16.gmra.mrb[0].mxu0 %v380
  %v701 = vpop.f32.mrb[0].mxu0
  %v702 = vadd.f32 0.0, %v701
  %v703 = vpop.f32.mrb[0].mxu0
  %v704 = vpop.f32.mrb[0].mxu0
  %v705 = vadd.f32 0.0, %v704
  %v706 = vpop.f32.mrb[0].mxu0
  %707 = vmatprep.mubr.bf16.mxu0 0
  %708 = vmatmul.mubr.bf16.gmra.mrb[0].mxu0 %v381
  %v709 = vpop.f32.mrb[0].mxu0
  %v710 = vadd.f32 0.0, %v709
  %v711 = vpop.f32.mrb[0].mxu0
  %v712 = vpop.f32.mrb[0].mxu0
  %v713 = vadd.f32 0.0, %v712
  %v714 = vpop.f32.mrb[0].mxu0
  %715 = vmatprep.mubr.bf16.mxu0 0
  %716 = vmatmul.mubr.bf16.gmra.mrb[0].mxu0 %v382
  %v717 = vpop.f32.mrb[0].mxu0
  %v718 = vadd.f32 0.0, %v717
  %v719 = vpop.f32.mrb[0].mxu0
  %v720 = vpop.f32.mrb[0].mxu0
  %v721 = vadd.f32 0.0, %v720
  %v722 = vpop.f32.mrb[0].mxu0
  %723 = vmatprep.mubr.bf16.mxu0 0
  %724 = vmatmul.mubr.bf16.gmra.mrb[0].mxu0 %v383
  %v725 = vpop.f32.mrb[0].mxu0
  %v726 = vadd.f32 0.0, %v725
  %v727 = vpop.f32.mrb[0].mxu0
  %v728 = vpop.f32.mrb[0].mxu0
  %v729 = vadd.f32 0.0, %v728
  %v730 = vpop.f32.mrb[0].mxu0
  %731 = vmatprep.mubr.bf16.mxu0 0
  %732 = vmatmul.mubr.bf16.gmra.mrb[0].mxu0 %v384
  %v733 = vpop.f32.mrb[0].mxu0
  %v734 = vadd.f32 0.0, %v733
  %v735 = vpop.f32.mrb[0].mxu0
  %v736 = vpop.f32.mrb[0].mxu0
  %v737 = vadd.f32 0.0, %v736
  %v738 = vpop.f32.mrb[0].mxu0
  %739 = vmatprep.mubr.bf16.mxu0 0
  %740 = vmatmul.mubr.bf16.gmra.mrb[0].mxu0 %v385
  %v741 = vpop.f32.mrb[0].mxu0
  %v742 = vadd.f32 0.0, %v741
  %v743 = vpop.f32.mrb[0].mxu0
  %v744 = vpop.f32.mrb[0].mxu0
  %v745 = vadd.f32 0.0, %v744
  %v746 = vpop.f32.mrb[0].mxu0
  %747 = vmatprep.mubr.bf16.mxu0 0
  %748 = vmatmul.mubr.bf16.gmra.mrb[0].mxu0 %v386
  %v749 = vpop.f32.mrb[0].mxu0
  %v750 = vadd.f32 0.0, %v749
  %v751 = vpop.f32.mrb[0].mxu0
  %v752 = vpop.f32.mrb[0].mxu0
  %v753 = vadd.f32 0.0, %v752
  %v754 = vpop.f32.mrb[0].mxu0
  %755 = vdwg.mxu0
  %v756 = vadd.f32 %v83, %v502
  %v757 = vadd.f32 %v84, %v505
  %v758 = vadd.f32 %v85, %v510
  %v759 = vadd.f32 %v86, %v513
  %v760 = vadd.f32 %v87, %v518
  %v761 = vadd.f32 %v88, %v521
  %v762 = vadd.f32 %v89, %v526
  %v763 = vadd.f32 %v90, %v529
  %v764 = vadd.f32 %v91, %v534
  %v765 = vadd.f32 %v92, %v537
  %v766 = vadd.f32 %v93, %v542
  %v767 = vadd.f32 %v94, %v545
  %v768 = vadd.f32 %v95, %v550
  %v769 = vadd.f32 %v96, %v553
  %v770 = vadd.f32 %v97, %v558
  %v771 = vadd.f32 %v98, %v561
  %v772 = vadd.f32 %v99, %v566
  %v773 = vadd.f32 %v100, %v569
  %v774 = vadd.f32 %v101, %v574
  %v775 = vadd.f32 %v102, %v577
  %v776 = vadd.f32 %v103, %v582
  %v777 = vadd.f32 %v104, %v585
  %v778 = vadd.f32 %v105, %v590
  %v779 = vadd.f32 %v106, %v593
  %v780 = vadd.f32 %v107, %v598
  %v781 = vadd.f32 %v108, %v601
  %v782 = vadd.f32 %v109, %v606
  %v783 = vadd.f32 %v110, %v609
  %v784 = vadd.f32 %v111, %v614
  %v785 = vadd.f32 %v112, %v617
  %v786 = vadd.f32 %v113, %v622
  %v787 = vadd.f32 %v114, %v625
  %v788 = vadd.f32 %v115, %v630
  %v789 = vadd.f32 %v116, %v633
  %v790 = vadd.f32 %v117, %v638
  %v791 = vadd.f32 %v118, %v641
  %v792 = vadd.f32 %v119, %v646
  %v793 = vadd.f32 %v120, %v649
  %v794 = vadd.f32 %v121, %v654
  %v795 = vadd.f32 %v122, %v657
  %v796 = vadd.f32 %v123, %v662
  %v797 = vadd.f32 %v124, %v665
  %v798 = vadd.f32 %v125, %v670
  %v799 = vadd.f32 %v126, %v673
  %v800 = vadd.f32 %v127, %v678
  %v801 = vadd.f32 %v128, %v681
  %v802 = vadd.f32 %v129, %v686
  %v803 = vadd.f32 %v130, %v689
  %v804 = vadd.f32 %v131, %v694
  %v805 = vadd.f32 %v132, %v697
  %v806 = vadd.f32 %v133, %v702
  %v807 = vadd.f32 %v134, %v705
  %v808 = vadd.f32 %v135, %v710
  %v809 = vadd.f32 %v136, %v713
  %v810 = vadd.f32 %v137, %v718
  %v811 = vadd.f32 %v138, %v721
  %v812 = vadd.f32 %v139, %v726
  %v813 = vadd.f32 %v140, %v729
  %v814 = vadd.f32 %v141, %v734
  %v815 = vadd.f32 %v142, %v737
  %v816 = vadd.f32 %v143, %v742
  %v817 = vadd.f32 %v144, %v745
  %v818 = vadd.f32 %v145, %v750
  %v819 = vadd.f32 %v146, %v753
  %820 = vst [vmem:[%s3] sm:$0xff] %v756
  %821 = vst [vmem:[%s3 + $0x8] sm:$0xff] %v757
  %822 = vst [vmem:[%s3 + $0x10] sm:$0xff] %v758
  %823 = vst [vmem:[%s3 + $0x18] sm:$0xff] %v759
  %824 = vst [vmem:[%s3 + $0x20] sm:$0xff] %v760
  %825 = vst [vmem:[%s3 + $0x28] sm:$0xff] %v761
  %826 = vst [vmem:[%s3 + $0x30] sm:$0xff] %v762
  %827 = vst [vmem:[%s3 + $0x38] sm:$0xff] %v763
  %828 = vst [vmem:[%s3 + $0x40] sm:$0xff] %v764
  %829 = vst [vmem:[%s3 + $0x48] sm:$0xff] %v765
  %830 = vst [vmem:[%s3 + $0x50] sm:$0xff] %v766
  %831 = vst [vmem:[%s3 + $0x58] sm:$0xff] %v767
  %832 = vst [vmem:[%s3 + $0x60] sm:$0xff] %v768
  %833 = vst [vmem:[%s3 + $0x68] sm:$0xff] %v769
  %834 = vst [vmem:[%s3 + $0x70] sm:$0xff] %v770
  %835 = vst [vmem:[%s3 + $0x78] sm:$0xff] %v771
  %836 = vst [vmem:[%s3 + $0x80] sm:$0xff] %v772
  %837 = vst [vmem:[%s3 + $0x88] sm:$0xff] %v773
  %838 = vst [vmem:[%s3 + $0x90] sm:$0xff] %v774
  %839 = vst [vmem:[%s3 + $0x98] sm:$0xff] %v775
  %840 = vst [vmem:[%s3 + $0xa0] sm:$0xff] %v776
  %841 = vst [vmem:[%s3 + $0xa8] sm:$0xff] %v777
  %842 = vst [vmem:[%s3 + $0xb0] sm:$0xff] %v778
  %843 = vst [vmem:[%s3 + $0xb8] sm:$0xff] %v779
  %844 = vst [vmem:[%s3 + $0xc0] sm:$0xff] %v780
  %845 = vst [vmem:[%s3 + $0xc8] sm:$0xff] %v781
  %846 = vst [vmem:[%s3 + $0xd0] sm:$0xff] %v782
  %847 = vst [vmem:[%s3 + $0xd8] sm:$0xff] %v783
  %848 = vst [vmem:[%s3 + $0xe0] sm:$0xff] %v784
  %849 = vst [vmem:[%s3 + $0xe8] sm:$0xff] %v785
  %850 = vst [vmem:[%s3 + $0xf0] sm:$0xff] %v786
  %851 = vst [vmem:[%s3 + $0xf8] sm:$0xff] %v787
  %852 = vst [vmem:[%s3 + $0x100] sm:$0xff] %v788
  %853 = vst [vmem:[%s3 + $0x108] sm:$0xff] %v789
  %854 = vst [vmem:[%s3 + $0x110] sm:$0xff] %v790
  %855 = vst [vmem:[%s3 + $0x118] sm:$0xff] %v791
  %856 = vst [vmem:[%s3 + $0x120] sm:$0xff] %v792
  %857 = vst [vmem:[%s3 + $0x128] sm:$0xff] %v793
  %858 = vst [vmem:[%s3 + $0x130] sm:$0xff] %v794
  %859 = vst [vmem:[%s3 + $0x138] sm:$0xff] %v795
  %860 = vst [vmem:[%s3 + $0x140] sm:$0xff] %v796
  %861 = vst [vmem:[%s3 + $0x148] sm:$0xff] %v797
  %862 = vst [vmem:[%s3 + $0x150] sm:$0xff] %v798
  %863 = vst [vmem:[%s3 + $0x158] sm:$0xff] %v799
  %864 = vst [vmem:[%s3 + $0x160] sm:$0xff] %v800
  %865 = vst [vmem:[%s3 + $0x168] sm:$0xff] %v801
  %866 = vst [vmem:[%s3 + $0x170] sm:$0xff] %v802
  %867 = vst [vmem:[%s3 + $0x178] sm:$0xff] %v803
  %868 = vst [vmem:[%s3 + $0x180] sm:$0xff] %v804
  %869 = vst [vmem:[%s3 + $0x188] sm:$0xff] %v805
  %870 = vst [vmem:[%s3 + $0x190] sm:$0xff] %v806
  %871 = vst [vmem:[%s3 + $0x198] sm:$0xff] %v807
  %872 = vst [vmem:[%s3 + $0x1a0] sm:$0xff] %v808
  %873 = vst [vmem:[%s3 + $0x1a8] sm:$0xff] %v809
  %874 = vst [vmem:[%s3 + $0x1b0] sm:$0xff] %v810
  %875 = vst [vmem:[%s3 + $0x1b8] sm:$0xff] %v811
  %876 = vst [vmem:[%s3 + $0x1c0] sm:$0xff] %v812
  %877 = vst [vmem:[%s3 + $0x1c8] sm:$0xff] %v813
  %878 = vst [vmem:[%s3 + $0x1d0] sm:$0xff] %v814
  %879 = vst [vmem:[%s3 + $0x1d8] sm:$0xff] %v815
  %880 = vst [vmem:[%s3 + $0x1e0] sm:$0xff] %v816
  %881 = vst [vmem:[%s3 + $0x1e8] sm:$0xff] %v817
  %882 = vst [vmem:[%s3 + $0x1f0] sm:$0xff] %v818
  %883 = vst [vmem:[%s3 + $0x1f8] sm:$0xff] %v819
  // Predicated region
  $region18: #{basic_conv_apply.2} parent=0 // pred_check
    %p884 = pneg %p15
  $region19: #{basic_conv_apply.2} parent=0 // pred_check_branch
    %886 = sbr.rel (%p884) target = $region21
  $region20: #{basic_conv_apply.2} parent=0 // pred_region
    %v887 = vld [vmem:[%s3] sm:$0xff]
    %v888 = vld [vmem:[%s3 + $0x8] sm:$0xff]
    %v889 = vld [vmem:[%s3 + $0x10] sm:$0xff]
    %v890 = vld [vmem:[%s3 + $0x18] sm:$0xff]
    %v891 = vld [vmem:[%s3 + $0x20] sm:$0xff]
    %v892 = vld [vmem:[%s3 + $0x28] sm:$0xff]
    %v893 = vld [vmem:[%s3 + $0x30] sm:$0xff]
    %v894 = vld [vmem:[%s3 + $0x38] sm:$0xff]
    %v895 = vld [vmem:[%s3 + $0x40] sm:$0xff]
    %v896 = vld [vmem:[%s3 + $0x48] sm:$0xff]
    %v897 = vld [vmem:[%s3 + $0x50] sm:$0xff]
    %v898 = vld [vmem:[%s3 + $0x58] sm:$0xff]
    %v899 = vld [vmem:[%s3 + $0x60] sm:$0xff]
    %v900 = vld [vmem:[%s3 + $0x68] sm:$0xff]
    %v901 = vld [vmem:[%s3 + $0x70] sm:$0xff]
    %v902 = vld [vmem:[%s3 + $0x78] sm:$0xff]
    %v903 = vld [vmem:[%s3 + $0x80] sm:$0xff]
    %v904 = vld [vmem:[%s3 + $0x88] sm:$0xff]
    %v905 = vld [vmem:[%s3 + $0x90] sm:$0xff]
    %v906 = vld [vmem:[%s3 + $0x98] sm:$0xff]
    %v907 = vld [vmem:[%s3 + $0xa0] sm:$0xff]
    %v908 = vld [vmem:[%s3 + $0xa8] sm:$0xff]
    %v909 = vld [vmem:[%s3 + $0xb0] sm:$0xff]
    %v910 = vld [vmem:[%s3 + $0xb8] sm:$0xff]
    %v911 = vld [vmem:[%s3 + $0xc0] sm:$0xff]
    %v912 = vld [vmem:[%s3 + $0xc8] sm:$0xff]
    %v913 = vld [vmem:[%s3 + $0xd0] sm:$0xff]
    %v914 = vld [vmem:[%s3 + $0xd8] sm:$0xff]
    %v915 = vld [vmem:[%s3 + $0xe0] sm:$0xff]
    %v916 = vld [vmem:[%s3 + $0xe8] sm:$0xff]
    %v917 = vld [vmem:[%s3 + $0xf0] sm:$0xff]
    %v918 = vld [vmem:[%s3 + $0xf8] sm:$0xff]
    %v919 = vld [vmem:[%s3 + $0x100] sm:$0xff]
    %v920 = vld [vmem:[%s3 + $0x108] sm:$0xff]
    %v921 = vld [vmem:[%s3 + $0x110] sm:$0xff]
    %v922 = vld [vmem:[%s3 + $0x118] sm:$0xff]
    %v923 = vld [vmem:[%s3 + $0x120] sm:$0xff]
    %v924 = vld [vmem:[%s3 + $0x128] sm:$0xff]
    %v925 = vld [vmem:[%s3 + $0x130] sm:$0xff]
    %v926 = vld [vmem:[%s3 + $0x138] sm:$0xff]
    %v927 = vld [vmem:[%s3 + $0x140] sm:$0xff]
    %v928 = vld [vmem:[%s3 + $0x148] sm:$0xff]
    %v929 = vld [vmem:[%s3 + $0x150] sm:$0xff]
    %v930 = vld [vmem:[%s3 + $0x158] sm:$0xff]
    %v931 = vld [vmem:[%s3 + $0x160] sm:$0xff]
    %v932 = vld [vmem:[%s3 + $0x168] sm:$0xff]
    %v933 = vld [vmem:[%s3 + $0x170] sm:$0xff]
    %v934 = vld [vmem:[%s3 + $0x178] sm:$0xff]
    %v935 = vld [vmem:[%s3 + $0x180] sm:$0xff]
    %v936 = vld [vmem:[%s3 + $0x188] sm:$0xff]
    %v937 = vld [vmem:[%s3 + $0x190] sm:$0xff]
    %v938 = vld [vmem:[%s3 + $0x198] sm:$0xff]
    %v939 = vld [vmem:[%s3 + $0x1a0] sm:$0xff]
    %v940 = vld [vmem:[%s3 + $0x1a8] sm:$0xff]
    %v941 = vld [vmem:[%s3 + $0x1b0] sm:$0xff]
    %v942 = vld [vmem:[%s3 + $0x1b8] sm:$0xff]
    %v943 = vld [vmem:[%s3 + $0x1c0] sm:$0xff]
    %v944 = vld [vmem:[%s3 + $0x1c8] sm:$0xff]
    %v945 = vld [vmem:[%s3 + $0x1d0] sm:$0xff]
    %v946 = vld [vmem:[%s3 + $0x1d8] sm:$0xff]
    %v947 = vld [vmem:[%s3 + $0x1e0] sm:$0xff]
    %v948 = vld [vmem:[%s3 + $0x1e8] sm:$0xff]
    %v949 = vld [vmem:[%s3 + $0x1f0] sm:$0xff]
    %v950 = vld [vmem:[%s3 + $0x1f8] sm:$0xff]
    %v951 = vld [vmem:[%s2] sm:$0x1]
    %v953 = vlaneseq
    %v954 = vshrl.u32 %v953, 7
    %v955 = vsub.s32 0, %v954
    %v956 = vrot.slane %v951, %v955
    %v958 = vadd.f32 %v887, %v956
    %v959 = vadd.f32 %v888, %v956
    %v960 = vadd.f32 %v889, %v956
    %v961 = vadd.f32 %v890, %v956
    %v962 = vadd.f32 %v891, %v956
    %v963 = vadd.f32 %v892, %v956
    %v964 = vadd.f32 %v893, %v956
    %v965 = vadd.f32 %v894, %v956
    %v966 = vadd.f32 %v895, %v956
    %v967 = vadd.f32 %v896, %v956
    %v968 = vadd.f32 %v897, %v956
    %v969 = vadd.f32 %v898, %v956
    %v970 = vadd.f32 %v899, %v956
    %v971 = vadd.f32 %v900, %v956
    %v972 = vadd.f32 %v901, %v956
    %v973 = vadd.f32 %v902, %v956
    %v974 = vadd.f32 %v903, %v956
    %v975 = vadd.f32 %v904, %v956
    %v976 = vadd.f32 %v905, %v956
    %v977 = vadd.f32 %v906, %v956
    %v978 = vadd.f32 %v907, %v956
    %v979 = vadd.f32 %v908, %v956
    %v980 = vadd.f32 %v909, %v956
    %v981 = vadd.f32 %v910, %v956
    %v982 = vadd.f32 %v911, %v956
    %v983 = vadd.f32 %v912, %v956
    %v984 = vadd.f32 %v913, %v956
    %v985 = vadd.f32 %v914, %v956
    %v986 = vadd.f32 %v915, %v956
    %v987 = vadd.f32 %v916, %v956
    %v988 = vadd.f32 %v917, %v956
    %v989 = vadd.f32 %v918, %v956
    %v990 = vadd.f32 %v919, %v956
    %v991 = vadd.f32 %v920, %v956
    %v992 = vadd.f32 %v921, %v956
    %v993 = vadd.f32 %v922, %v956
    %v994 = vadd.f32 %v923, %v956
    %v995 = vadd.f32 %v924, %v956
    %v996 = vadd.f32 %v925, %v956
    %v997 = vadd.f32 %v926, %v956
    %v998 = vadd.f32 %v927, %v956
    %v999 = vadd.f32 %v928, %v956
    %v1000 = vadd.f32 %v929, %v956
    %v1001 = vadd.f32 %v930, %v956
    %v1002 = vadd.f32 %v931, %v956
    %v1003 = vadd.f32 %v932, %v956
    %v1004 = vadd.f32 %v933, %v956
    %v1005 = vadd.f32 %v934, %v956
    %v1006 = vadd.f32 %v935, %v956
    %v1007 = vadd.f32 %v936, %v956
    %v1008 = vadd.f32 %v937, %v956
    %v1009 = vadd.f32 %v938, %v956
    %v1010 = vadd.f32 %v939, %v956
    %v1011 = vadd.f32 %v940, %v956
    %v1012 = vadd.f32 %v941, %v956
    %v1013 = vadd.f32 %v942, %v956
    %v1014 = vadd.f32 %v943, %v956
    %v1015 = vadd.f32 %v944, %v956
    %v1016 = vadd.f32 %v945, %v956
    %v1017 = vadd.f32 %v946, %v956
    %v1018 = vadd.f32 %v947, %v956
    %v1019 = vadd.f32 %v948, %v956
    %v1020 = vadd.f32 %v949, %v956
    %v1021 = vadd.f32 %v950, %v956
    %1022 = vst [vmem:[%s3] sm:$0xff] %v958
    %1023 = vst [vmem:[%s3 + $0x8] sm:$0xff] %v959
    %1024 = vst [vmem:[%s3 + $0x10] sm:$0xff] %v960
    %1025 = vst [vmem:[%s3 + $0x18] sm:$0xff] %v961
    %1026 = vst [vmem:[%s3 + $0x20] sm:$0xff] %v962
    %1027 = vst [vmem:[%s3 + $0x28] sm:$0xff] %v963
    %1028 = vst [vmem:[%s3 + $0x30] sm:$0xff] %v964
    %1029 = vst [vmem:[%s3 + $0x38] sm:$0xff] %v965
    %1030 = vst [vmem:[%s3 + $0x40] sm:$0xff] %v966
    %1031 = vst [vmem:[%s3 + $0x48] sm:$0xff] %v967
    %1032 = vst [vmem:[%s3 + $0x50] sm:$0xff] %v968
    %1033 = vst [vmem:[%s3 + $0x58] sm:$0xff] %v969
    %1034 = vst [vmem:[%s3 + $0x60] sm:$0xff] %v970
    %1035 = vst [vmem:[%s3 + $0x68] sm:$0xff] %v971
    %1036 = vst [vmem:[%s3 + $0x70] sm:$0xff] %v972
    %1037 = vst [vmem:[%s3 + $0x78] sm:$0xff] %v973
    %1038 = vst [vmem:[%s3 + $0x80] sm:$0xff] %v974
    %1039 = vst [vmem:[%s3 + $0x88] sm:$0xff] %v975
    %1040 = vst [vmem:[%s3 + $0x90] sm:$0xff] %v976
    %1041 = vst [vmem:[%s3 + $0x98] sm:$0xff] %v977
    %1042 = vst [vmem:[%s3 + $0xa0] sm:$0xff] %v978
    %1043 = vst [vmem:[%s3 + $0xa8] sm:$0xff] %v979
    %1044 = vst [vmem:[%s3 + $0xb0] sm:$0xff] %v980
    %1045 = vst [vmem:[%s3 + $0xb8] sm:$0xff] %v981
    %1046 = vst [vmem:[%s3 + $0xc0] sm:$0xff] %v982
    %1047 = vst [vmem:[%s3 + $0xc8] sm:$0xff] %v983
    %1048 = vst [vmem:[%s3 + $0xd0] sm:$0xff] %v984
    %1049 = vst [vmem:[%s3 + $0xd8] sm:$0xff] %v985
    %1050 = vst [vmem:[%s3 + $0xe0] sm:$0xff] %v986
    %1051 = vst [vmem:[%s3 + $0xe8] sm:$0xff] %v987
    %1052 = vst [vmem:[%s3 + $0xf0] sm:$0xff] %v988
    %1053 = vst [vmem:[%s3 + $0xf8] sm:$0xff] %v989
    %1054 = vst [vmem:[%s3 + $0x100] sm:$0xff] %v990
    %1055 = vst [vmem:[%s3 + $0x108] sm:$0xff] %v991
    %1056 = vst [vmem:[%s3 + $0x110] sm:$0xff] %v992
    %1057 = vst [vmem:[%s3 + $0x118] sm:$0xff] %v993
    %1058 = vst [vmem:[%s3 + $0x120] sm:$0xff] %v994
    %1059 = vst [vmem:[%s3 + $0x128] sm:$0xff] %v995
    %1060 = vst [vmem:[%s3 + $0x130] sm:$0xff] %v996
    %1061 = vst [vmem:[%s3 + $0x138] sm:$0xff] %v997
    %1062 = vst [vmem:[%s3 + $0x140] sm:$0xff] %v998
    %1063 = vst [vmem:[%s3 + $0x148] sm:$0xff] %v999
    %1064 = vst [vmem:[%s3 + $0x150] sm:$0xff] %v1000
    %1065 = vst [vmem:[%s3 + $0x158] sm:$0xff] %v1001
    %1066 = vst [vmem:[%s3 + $0x160] sm:$0xff] %v1002
    %1067 = vst [vmem:[%s3 + $0x168] sm:$0xff] %v1003
    %1068 = vst [vmem:[%s3 + $0x170] sm:$0xff] %v1004
    %1069 = vst [vmem:[%s3 + $0x178] sm:$0xff] %v1005
    %1070 = vst [vmem:[%s3 + $0x180] sm:$0xff] %v1006
    %1071 = vst [vmem:[%s3 + $0x188] sm:$0xff] %v1007
    %1072 = vst [vmem:[%s3 + $0x190] sm:$0xff] %v1008
    %1073 = vst [vmem:[%s3 + $0x198] sm:$0xff] %v1009
    %1074 = vst [vmem:[%s3 + $0x1a0] sm:$0xff] %v1010
    %1075 = vst [vmem:[%s3 + $0x1a8] sm:$0xff] %v1011
    %1076 = vst [vmem:[%s3 + $0x1b0] sm:$0xff] %v1012
    %1077 = vst [vmem:[%s3 + $0x1b8] sm:$0xff] %v1013
    %1078 = vst [vmem:[%s3 + $0x1c0] sm:$0xff] %v1014
    %1079 = vst [vmem:[%s3 + $0x1c8] sm:$0xff] %v1015
    %1080 = vst [vmem:[%s3 + $0x1d0] sm:$0xff] %v1016
    %1081 = vst [vmem:[%s3 + $0x1d8] sm:$0xff] %v1017
    %1082 = vst [vmem:[%s3 + $0x1e0] sm:$0xff] %v1018
    %1083 = vst [vmem:[%s3 + $0x1e8] sm:$0xff] %v1019
    %1084 = vst [vmem:[%s3 + $0x1f0] sm:$0xff] %v1020
    %1085 = vst [vmem:[%s3 + $0x1f8] sm:$0xff] %v1021
  $region21: #{basic_conv_apply.2} parent=0 // pred_fallthru
    _
  // Predicated region
  $region22: #{basic_conv_apply.2} parent=0 // pred_check
    _
  $region23: #{basic_conv_apply.2} parent=0 // pred_check_branch
    %1087 = sbr.rel (0) target = $region25
  $region24: #{basic_conv_apply.2} parent=0 // pred_region
    _
  $region25: #{basic_conv_apply.2} parent=0 // pred_fallthru
    _
  // Predicated region
  $region26: #{basic_conv_apply.2} parent=0 // pred_check
    _
  $region27: #{basic_conv_apply.2} parent=0 // pred_check_branch
    %1089 = sbr.rel (0) target = $region29
  $region28: #{basic_conv_apply.2} parent=0 // pred_region
    _
  $region29: #{basic_conv_apply.2} parent=0 // pred_fallthru
    _

</llo_original>
